<compile_context>
chip_gen: v7x
topology: tpu7x:2x2x1
jax: 0.10.0
libtpu: 0.0.40
codegen_flags: <defaults>
</compile_context>

<pallas_src>
import functools

import jax
import jax.numpy as jnp
from jax.experimental import pallas as pl
from jax.experimental.pallas import tpu as pltpu


# ----------------------------- kernels --------------------------------------


def _maxout_kernel(x_ref, w_ref, b_ref, o_ref, *, pieces):
    """All pieces folded into the body: `pieces` matmuls + running max, one store."""
    x = x_ref[...]
    m = jnp.dot(x, w_ref[0], preferred_element_type=jnp.float32) + b_ref[0]
    for p in range(1, pieces):
        y = jnp.dot(x, w_ref[p], preferred_element_type=jnp.float32) + b_ref[p]
        m = jnp.maximum(m, y)
    o_ref[...] = m.astype(o_ref.dtype)


def _maxout_kernel_ktiled(x_ref, w_ref, b_ref, o_ref, acc_ref, *, pieces):
    """Large-D_in path: K (D_in) grid axis innermost, per-piece f32 accumulators."""
    k = pl.program_id(2)

    @pl.when(k == 0)
    def _():
        acc_ref[...] = jnp.zeros_like(acc_ref)

    x = x_ref[...]
    for p in range(pieces):
        acc_ref[p] += jnp.dot(x, w_ref[p], preferred_element_type=jnp.float32)

    @pl.when(k == pl.num_programs(2) - 1)
    def _():
        m = acc_ref[0] + b_ref[0]
        for p in range(1, pieces):
            m = jnp.maximum(m, acc_ref[p] + b_ref[p])
        o_ref[...] = m.astype(o_ref.dtype)


# ----------------------------- planning --------------------------------------


def _vmem_capacity_bytes():
    try:
        return int(pltpu.get_tpu_info().vmem_capacity_bytes)
    except Exception:
        return 64 << 20  # conservative fallback: v7x per-TensorCore VMEM


def _round_down(x, m):
    return (x // m) * m


def _round_up(x, m):
    return ((x + m - 1) // m) * m


def _pick_tile(dim, base, cap):
    """Tile for `dim`: a multiple of `base` <= cap. Prefers the full dim when it
    fits, then exact divisors; otherwise uses `cap` with a masked edge block
    (grid uses pl.cdiv), never a full-dim blowup."""
    if dim <= cap:
        return dim
    cap = max(base, _round_down(cap, base))
    best_div = 0
    t = base
    while t <= cap:
        if dim % t == 0:
            best_div = t
        t += base
    if best_div * 2 >= cap:
        return best_div
    return cap


def _plan(B, D_in, D_out, pieces, isz, out_isz):
    vmem_cap = _vmem_capacity_bytes()
    # Headroom under the physical ceiling for compiler-internal scratch/semaphores:
    # v7x (64 MiB) -> ~51 MiB, v6e/v5e (128 MiB) -> ~102 MiB.
    vmem_limit = max(32 << 20, vmem_cap - max(12 << 20, vmem_cap // 5))
    usable = (vmem_limit * 3) // 4  # budget for our (double-buffered) blocks

    sub = {4: 8, 2: 16, 1: 32}.get(isz, 8)  # sublane packing for the input dtype

    # --- K (D_in) tiling: only when the un-tiled D_in blocks cannot fit. ---
    def _fits(tk_):
        tn0 = min(D_out, 128)
        tm0 = min(B, sub)
        need = isz * (2 * tm0 * tk_ + 2 * pieces * tk_ * tn0 + 2 * pieces * tn0) \
            + out_isz * 2 * tm0 * tn0
        if tk_ < D_in:
            need += 4 * pieces * tm0 * tn0  # f32 accumulator scratch
        return need <= usable

    tk = D_in
    if not _fits(D_in):
        divs = [t for t in range(128, D_in, 128) if D_in % t == 0 and _fits(t)]
        if divs:
            tk = max(divs)
        # TODO(synk): pad D_in in the wrapper when it is huge and has no
        # 128-aligned divisor that fits; for now we fall through un-tiled.
    k_tiled = tk < D_in

    # --- tn: the (pieces, tk, tn) weight slab gets at most ~half the budget. ---
    tn_cap = max(128, (usable // 2) // max(1, 2 * pieces * tk * isz))
    tn_cap = min(tn_cap, 2048)
    tn_base = 256 if (tn_cap >= 256 and D_out % 256 == 0) else 128  # v6e/v7x MXU is 256-wide
    tn = _pick_tile(D_out, tn_base, tn_cap)

    # --- tm: spend what is left on x / out (/ acc) rows. ---
    w_fp = 2 * pieces * tk * tn * isz + 2 * pieces * tn * isz
    row_cost = 2 * tk * isz + 2 * tn * out_isz + (4 * pieces * tn if k_tiled else 0)
    tm_cap = max(sub, (usable - w_fp) // max(1, row_cost))
    tm_cap = min(tm_cap, 1024)
    tm = _pick_tile(B, sub, tm_cap)

    # Single-block problems: split B in two so both TensorCores (v7x megacore)
    # get work; essentially free when memory-bound.
    if (not k_tiled) and tm >= B and tn >= D_out and B >= 2 * sub:
        tm = max(sub, min(_round_up(pl.cdiv(B, 2), sub), _round_down(B, sub)))

    return tm, tn, tk, k_tiled, int(vmem_limit)


# ----------------------------- wrapper ----------------------------------------


def maxout(x, w, b, *, tile_override=None):
    """Maxout forward: out[b, o] = max_p (x @ W[p] + b[p])[b, o].

    x: [B, D_in], w: [pieces, D_in, D_out], b: [pieces, 1, D_out] -> [B, D_out].
    `tile_override=(tm, tn, tk)` bypasses the planner (testing / tuning).
    """
    B, D_in = x.shape
    pieces, _, D_out = w.shape
    isz = x.dtype.itemsize
    out_dtype = x.dtype

    if tile_override is not None:
        tm, tn, tk = tile_override
        k_tiled = tk < D_in
        _, _, _, _, vmem_limit = _plan(B, D_in, D_out, pieces, isz, out_dtype.itemsize)
    else:
        tm, tn, tk, k_tiled, vmem_limit = _plan(B, D_in, D_out, pieces, isz,
                                                out_dtype.itemsize)

    out_shape = jax.ShapeDtypeStruct((B, D_out), out_dtype)

    if not k_tiled:
        # grid = (D_out tiles, B tiles); B innermost -> W[:, :, j] stays resident.
        grid = (pl.cdiv(D_out, tn), pl.cdiv(B, tm))
        kernel = functools.partial(_maxout_kernel, pieces=pieces)
        in_specs = [
            pl.BlockSpec((tm, D_in), lambda j, i: (i, 0)),            # x tile
            pl.BlockSpec((pieces, D_in, tn), lambda j, i: (0, 0, j)),  # all pieces of W
            pl.BlockSpec((pieces, 1, tn), lambda j, i: (0, 0, j)),     # all pieces of b
        ]
        out_specs = pl.BlockSpec((tm, tn), lambda j, i: (i, j))
        scratch = []
        dims = ("parallel", "parallel")
    else:
        assert D_in % tk == 0, "K tiling requires tk to divide D_in"
        grid = (pl.cdiv(D_out, tn), pl.cdiv(B, tm), D_in // tk)
        kernel = functools.partial(_maxout_kernel_ktiled, pieces=pieces)
        in_specs = [
            pl.BlockSpec((tm, tk), lambda j, i, k: (i, k)),               # x tile
            pl.BlockSpec((pieces, tk, tn), lambda j, i, k: (0, k, j)),     # W tile (all pieces)
            pl.BlockSpec((pieces, 1, tn), lambda j, i, k: (0, 0, j)),      # b tile (all pieces)
        ]
        out_specs = pl.BlockSpec((tm, tn), lambda j, i, k: (i, j))
        scratch = [pltpu.VMEM((pieces, tm, tn), jnp.float32)]
        dims = ("parallel", "parallel", "arbitrary")  # K is the reduction axis

    return pl.pallas_call(
        kernel,
        out_shape=out_shape,
        grid_spec=pltpu.PrefetchScalarGridSpec(
            num_scalar_prefetch=0,
            grid=grid,
            in_specs=in_specs,
            out_specs=out_specs,
            scratch_shapes=scratch,
        ),
        compiler_params=pltpu.CompilerParams(
            dimension_semantics=dims,
            vmem_limit_bytes=vmem_limit,
        ),
    )(x, w, b)


def maxout_ref(x, w, b):
    # Pure-JAX reference matching the PyTorch forward.
    ys = jnp.einsum("bi,pio->pbo", x, w) + b  # [pieces, B, D_out]
    return jnp.max(ys, axis=0)


if __name__ == "__main__":
    key = jax.random.PRNGKey(0)

    # --- module-default dims (input_dim=784, output_dim=240, pieces=5), small batch ---
    B, D_in, D_out, pieces = 8, 784, 240, 5
    kx, kw, kb, k2 = jax.random.split(key, 4)
    x = jax.random.normal(kx, (B, D_in), dtype=jnp.float32)
    bound = 1.0 / jnp.sqrt(jnp.float32(D_in))
    w = jax.random.uniform(kw, (pieces, D_in, D_out), jnp.float32, -bound, bound)
    b = jax.random.uniform(kb, (pieces, 1, D_out), jnp.float32, -bound, bound)

    out = jax.block_until_ready(maxout(x, w, b))
    ref = maxout_ref(x, w, b)
    assert out.shape == (B, D_out)
    assert jnp.allclose(out, ref, atol=2e-5, rtol=1e-5)

    # --- force the K-tiled (large-D_in) path at a small, aligned size ---
    B2, D_in2, D_out2, pieces2 = 16, 256, 256, 3
    kx2, kw2, kb2 = jax.random.split(k2, 3)
    x2 = jax.random.normal(kx2, (B2, D_in2), dtype=jnp.float32)
    bound2 = 1.0 / jnp.sqrt(jnp.float32(D_in2))
    w2 = jax.random.uniform(kw2, (pieces2, D_in2, D_out2), jnp.float32, -bound2, bound2)
    b2 = jax.random.uniform(kb2, (pieces2, 1, D_out2), jnp.float32, -bound2, bound2)

    out2 = jax.block_until_ready(maxout(x2, w2, b2, tile_override=(8, 128, 128)))
    ref2 = maxout_ref(x2, w2, b2)
    assert out2.shape == (B2, D_out2)
    assert jnp.allclose(out2, ref2, atol=2e-5, rtol=1e-5)

    print("KERNEL_OK")
</pallas_src>

<mosaic_0001>
module attributes {stable_mosaic.version = 11 : i64} {
  func.func @_maxout_kernel(%arg0: i32, %arg1: i32, %arg2: memref<8x784xf32, #tpu.memory_space<vmem>>, %arg3: memref<5x784x240xf32, #tpu.memory_space<vmem>>, %arg4: memref<5x1x240xf32, #tpu.memory_space<vmem>>, %arg5: memref<8x240xf32, #tpu.memory_space<vmem>>) attributes {dimension_semantics = [#tpu.dimension_semantics<parallel>, #tpu.dimension_semantics<parallel>], iteration_bounds = array<i64: 1, 1>, scalar_prefetch = 0 : i64, scratch_operands = 0 : i64, tpu.core_type = #tpu.core_type<tc>, window_params = [{transform_indices = @transform_0, window_bounds = array<i64: 8, 784>}, {transform_indices = @transform_1, window_bounds = array<i64: 5, 784, 240>}, {transform_indices = @transform_2, window_bounds = array<i64: 5, 1, 240>}, {transform_indices = @transform_3, window_bounds = array<i64: 8, 240>}]} {
    %c0 = arith.constant 0 : index
    %c0_0 = arith.constant 0 : index
    %0 = vector.load %arg2[%c0, %c0_0] : memref<8x784xf32, #tpu.memory_space<vmem>>, vector<8x784xf32>
    %c0_1 = arith.constant 0 : index
    %c0_2 = arith.constant 0 : index
    %c0_3 = arith.constant 0 : index
    %1 = vector.load %arg3[%c0_1, %c0_2, %c0_3] : memref<5x784x240xf32, #tpu.memory_space<vmem>>, vector<1x784x240xf32>
    %2 = vector.shape_cast %1 : vector<1x784x240xf32> to vector<784x240xf32>
    %cst = arith.constant dense<0.000000e+00> : vector<8x240xf32>
    %3 = tpu.matmul %0, %2, %cst {dimension_numbers = #tpu.dot_dimension_numbers<[1], [0], [0], [1], [0, 0, 1, 1], [], []>} : vector<8x784xf32>, vector<784x240xf32>, vector<8x240xf32> -> vector<8x240xf32>
    %c0_4 = arith.constant 0 : index
    %c0_5 = arith.constant 0 : index
    %c0_6 = arith.constant 0 : index
    %4 = vector.load %arg4[%c0_4, %c0_5, %c0_6] : memref<5x1x240xf32, #tpu.memory_space<vmem>>, vector<1x1x240xf32>
    %5 = vector.shape_cast %4 : vector<1x1x240xf32> to vector<1x240xf32>
    %6 = vector.broadcast %5 : vector<1x240xf32> to vector<8x240xf32>
    %7 = arith.addf %3, %6 : vector<8x240xf32>
    %c1 = arith.constant 1 : index
    %c0_7 = arith.constant 0 : index
    %c0_8 = arith.constant 0 : index
    %8 = vector.load %arg3[%c1, %c0_7, %c0_8] : memref<5x784x240xf32, #tpu.memory_space<vmem>>, vector<1x784x240xf32>
    %9 = vector.shape_cast %8 : vector<1x784x240xf32> to vector<784x240xf32>
    %cst_9 = arith.constant dense<0.000000e+00> : vector<8x240xf32>
    %10 = tpu.matmul %0, %9, %cst_9 {dimension_numbers = #tpu.dot_dimension_numbers<[1], [0], [0], [1], [0, 0, 1, 1], [], []>} : vector<8x784xf32>, vector<784x240xf32>, vector<8x240xf32> -> vector<8x240xf32>
    %c1_10 = arith.constant 1 : index
    %c0_11 = arith.constant 0 : index
    %c0_12 = arith.constant 0 : index
    %11 = vector.load %arg4[%c1_10, %c0_11, %c0_12] : memref<5x1x240xf32, #tpu.memory_space<vmem>>, vector<1x1x240xf32>
    %12 = vector.shape_cast %11 : vector<1x1x240xf32> to vector<1x240xf32>
    %13 = vector.broadcast %12 : vector<1x240xf32> to vector<8x240xf32>
    %14 = arith.addf %10, %13 : vector<8x240xf32>
    %15 = arith.maximumf %7, %14 : vector<8x240xf32>
    %c2 = arith.constant 2 : index
    %c0_13 = arith.constant 0 : index
    %c0_14 = arith.constant 0 : index
    %16 = vector.load %arg3[%c2, %c0_13, %c0_14] : memref<5x784x240xf32, #tpu.memory_space<vmem>>, vector<1x784x240xf32>
    %17 = vector.shape_cast %16 : vector<1x784x240xf32> to vector<784x240xf32>
    %cst_15 = arith.constant dense<0.000000e+00> : vector<8x240xf32>
    %18 = tpu.matmul %0, %17, %cst_15 {dimension_numbers = #tpu.dot_dimension_numbers<[1], [0], [0], [1], [0, 0, 1, 1], [], []>} : vector<8x784xf32>, vector<784x240xf32>, vector<8x240xf32> -> vector<8x240xf32>
    %c2_16 = arith.constant 2 : index
    %c0_17 = arith.constant 0 : index
    %c0_18 = arith.constant 0 : index
    %19 = vector.load %arg4[%c2_16, %c0_17, %c0_18] : memref<5x1x240xf32, #tpu.memory_space<vmem>>, vector<1x1x240xf32>
    %20 = vector.shape_cast %19 : vector<1x1x240xf32> to vector<1x240xf32>
    %21 = vector.broadcast %20 : vector<1x240xf32> to vector<8x240xf32>
    %22 = arith.addf %18, %21 : vector<8x240xf32>
    %23 = arith.maximumf %15, %22 : vector<8x240xf32>
    %c3 = arith.constant 3 : index
    %c0_19 = arith.constant 0 : index
    %c0_20 = arith.constant 0 : index
    %24 = vector.load %arg3[%c3, %c0_19, %c0_20] : memref<5x784x240xf32, #tpu.memory_space<vmem>>, vector<1x784x240xf32>
    %25 = vector.shape_cast %24 : vector<1x784x240xf32> to vector<784x240xf32>
    %cst_21 = arith.constant dense<0.000000e+00> : vector<8x240xf32>
    %26 = tpu.matmul %0, %25, %cst_21 {dimension_numbers = #tpu.dot_dimension_numbers<[1], [0], [0], [1], [0, 0, 1, 1], [], []>} : vector<8x784xf32>, vector<784x240xf32>, vector<8x240xf32> -> vector<8x240xf32>
    %c3_22 = arith.constant 3 : index
    %c0_23 = arith.constant 0 : index
    %c0_24 = arith.constant 0 : index
    %27 = vector.load %arg4[%c3_22, %c0_23, %c0_24] : memref<5x1x240xf32, #tpu.memory_space<vmem>>, vector<1x1x240xf32>
    %28 = vector.shape_cast %27 : vector<1x1x240xf32> to vector<1x240xf32>
    %29 = vector.broadcast %28 : vector<1x240xf32> to vector<8x240xf32>
    %30 = arith.addf %26, %29 : vector<8x240xf32>
    %31 = arith.maximumf %23, %30 : vector<8x240xf32>
    %c4 = arith.constant 4 : index
    %c0_25 = arith.constant 0 : index
    %c0_26 = arith.constant 0 : index
    %32 = vector.load %arg3[%c4, %c0_25, %c0_26] : memref<5x784x240xf32, #tpu.memory_space<vmem>>, vector<1x784x240xf32>
    %33 = vector.shape_cast %32 : vector<1x784x240xf32> to vector<784x240xf32>
    %cst_27 = arith.constant dense<0.000000e+00> : vector<8x240xf32>
    %34 = tpu.matmul %0, %33, %cst_27 {dimension_numbers = #tpu.dot_dimension_numbers<[1], [0], [0], [1], [0, 0, 1, 1], [], []>} : vector<8x784xf32>, vector<784x240xf32>, vector<8x240xf32> -> vector<8x240xf32>
    %c4_28 = arith.constant 4 : index
    %c0_29 = arith.constant 0 : index
    %c0_30 = arith.constant 0 : index
    %35 = vector.load %arg4[%c4_28, %c0_29, %c0_30] : memref<5x1x240xf32, #tpu.memory_space<vmem>>, vector<1x1x240xf32>
    %36 = vector.shape_cast %35 : vector<1x1x240xf32> to vector<1x240xf32>
    %37 = vector.broadcast %36 : vector<1x240xf32> to vector<8x240xf32>
    %38 = arith.addf %34, %37 : vector<8x240xf32>
    %39 = arith.maximumf %31, %38 : vector<8x240xf32>
    %c0_31 = arith.constant 0 : index
    %c0_32 = arith.constant 0 : index
    %40 = vector.load %arg5[%c0_31, %c0_32] : memref<8x240xf32, #tpu.memory_space<vmem>>, vector<8x240xf32>
    tpu.vector_store %arg5[%c0_31, %c0_32], %39 {strides = array<i32>} : memref<8x240xf32, #tpu.memory_space<vmem>>, vector<8x240xf32>,
    return
  }
  func.func @transform_0(%arg0: i32, %arg1: i32) -> (i32, i32) {
    %c0_i32 = arith.constant 0 : i32
    %c0_i32_0 = arith.constant 0 : i32
    return %arg1, %c0_i32 : i32, i32
  }
  func.func @transform_1(%arg0: i32, %arg1: i32) -> (i32, i32, i32) {
    %c0_i32 = arith.constant 0 : i32
    %c0_i32_0 = arith.constant 0 : i32
    %c0_i32_1 = arith.constant 0 : i32
    return %c0_i32, %c0_i32_0, %arg0 : i32, i32, i32
  }
  func.func @transform_2(%arg0: i32, %arg1: i32) -> (i32, i32, i32) {
    %c0_i32 = arith.constant 0 : i32
    %c0_i32_0 = arith.constant 0 : i32
    %c0_i32_1 = arith.constant 0 : i32
    return %c0_i32, %c0_i32_0, %arg0 : i32, i32, i32
  }
  func.func @transform_3(%arg0: i32, %arg1: i32) -> (i32, i32) {
    %c0_i32 = arith.constant 0 : i32
    return %arg1, %arg0 : i32, i32
  }
}

</mosaic_0001>

<llo_original>
// kernel: tpu_custom_call.1
$region0: #{tpu_custom_call.1}
  #allocation0 [shape = 'u32[]', space=smem, size = 0x4, offset = 0x4, fixed_abs, tag = 'smem constant byte address 0x4 - core index']
  #allocation1 [shape = 'u32[144,128]{1,0:T(1,128)}', space=vmem, size = 0x12000, scoped, tag = 'internal scratch']
  %s0 = inlined_call_operand.hbm [shape: f32[8,784], index: 0, kind: input, shape index: {}]
  %s1 = inlined_call_operand.hbm [shape: f32[5,784,240], index: 1, kind: input, shape index: {}]
  %s2 = inlined_call_operand.hbm [shape: f32[5,1,240], index: 2, kind: input, shape index: {}]
  %s3 = inlined_call_operand.hbm [shape: f32[8,240], index: 3, kind: output, shape index: {}]
  %s4 = sld [smem:[#allocation0]]
  $region34: #{tpu_custom_call.1} parent=0
    _
  %s6 = ssub.s32 1, %s4
  %s7 = scalar_select 0, %s6, %s4
  $region1: #{tpu_custom_call.1} parent=0
    #allocation2 [shape = 'u8[28672]{0}', space=vmem, size = 0x7000, scoped, tag = 'input window, operand 0, single buffered']
    #allocation3 [shape = 's32[1]{0}', space=sflag, size = 0x4, scoped, tag = 'scoped memory for tpu_custom_call.1']
    #allocation4 [shape = 's32[1]{0}', space=sflag, size = 0x4, scoped, tag = 'scoped memory for tpu_custom_call.1']
    #allocation5 [shape = 'u8[4014080]{0}', space=vmem, size = 0x3d4000, scoped, tag = 'input window, operand 1, single buffered']
    #allocation6 [shape = 's32[1]{0}', space=sflag, size = 0x4, scoped, tag = 'scoped memory for tpu_custom_call.1']
    #allocation7 [shape = 'u8[5120]{0}', space=vmem, size = 0x1400, scoped, tag = 'input window, operand 2, single buffered']
    #allocation8 [shape = 'u8[8192]{0}', space=vmem, size = 0x2000, scoped, tag = 'output window, operand 0, single buffered']
    %8 = vsyncpa [#allocation3], 0
    %9 = vsyncpa [#allocation6], 0
    %10 = vsyncpa [#allocation4], 0
    // Predicated region
    $region2: #{tpu_custom_call.1} parent=1 // pred_check
      _
    $region3: #{tpu_custom_call.1} parent=1 // pred_check_branch
      %12 = sbr.rel (0) target = $region5
    $region4: #{tpu_custom_call.1} parent=1 // pred_region
      %s14 = ssub.s32 896, 896
      %15 = vsyncadd [#allocation3], %s14
      %s17 = sshll.u32 [#allocation2], 4
      %s18 = int_to_ptr.vmem [resolvable:$true] %s17
      %20 = dma.hbm_to_vmem [thread:$0]  %s0, 896, %s18, [#allocation3]
    $region5: #{tpu_custom_call.1} parent=1 // pred_fallthru
      _
    // Predicated region
    $region6: #{tpu_custom_call.1} parent=1 // pred_check
      _
    $region7: #{tpu_custom_call.1} parent=1 // pred_check_branch
      %22 = sbr.rel (0) target = $region9
    $region8: #{tpu_custom_call.1} parent=1 // pred_region
      %s24 = ssub.s32 125440, 125440
      %25 = vsyncadd [#allocation6], %s24
      %s26 = sshll.u32 [#allocation5], 4
      %s27 = int_to_ptr.vmem [resolvable:$true] %s26
      %32 = dma.hbm_to_vmem [thread:$0]  %s1, 125440, %s27, [#allocation6], 256, 256, 16
    $region9: #{tpu_custom_call.1} parent=1 // pred_fallthru
      _
    // Predicated region
    $region10: #{tpu_custom_call.1} parent=1 // pred_check
      _
    $region11: #{tpu_custom_call.1} parent=1 // pred_check_branch
      %34 = sbr.rel (0) target = $region13
    $region12: #{tpu_custom_call.1} parent=1 // pred_region
      %s36 = ssub.s32 160, 160
      %37 = vsyncadd [#allocation6], %s36
      %s38 = sshll.u32 [#allocation7], 4
      %s39 = int_to_ptr.vmem [resolvable:$true] %s38
      %44 = dma.hbm_to_vmem [thread:$0]  %s2, 160, %s39, [#allocation6], 32, 32, 2
    $region13: #{tpu_custom_call.1} parent=1 // pred_fallthru
      _
    // Predicated region
    $region14: #{tpu_custom_call.1} parent=1 // pred_check
      _
    $region15: #{tpu_custom_call.1} parent=1 // pred_check_branch
      %46 = sbr.rel (0) target = $region17
    $region16: #{tpu_custom_call.1} parent=1 // pred_region
      %47 = dma.done [#allocation3], 896
    $region17: #{tpu_custom_call.1} parent=1 // pred_fallthru
      _
    // Predicated region
    $region18: #{tpu_custom_call.1} parent=1 // pred_check
      _
    $region19: #{tpu_custom_call.1} parent=1 // pred_check_branch
      %49 = sbr.rel (0) target = $region21
    $region20: #{tpu_custom_call.1} parent=1 // pred_region
      %50 = dma.done [#allocation6], 125440
    $region21: #{tpu_custom_call.1} parent=1 // pred_fallthru
      _
    // Predicated region
    $region22: #{tpu_custom_call.1} parent=1 // pred_check
      _
    $region23: #{tpu_custom_call.1} parent=1 // pred_check_branch
      %52 = sbr.rel (0) target = $region25
    $region24: #{tpu_custom_call.1} parent=1 // pred_region
      %53 = dma.done [#allocation6], 160
    $region25: #{tpu_custom_call.1} parent=1 // pred_fallthru
      _
    %v54 = vld [vmem:[#allocation2] sm:$0xff]
    %v55 = vld [vmem:[#allocation2 + $0x8] sm:$0xff]
    %v56 = vld [vmem:[#allocation2 + $0x10] sm:$0xff]
    %v57 = vld [vmem:[#allocation2 + $0x18] sm:$0xff]
    %v58 = vld [vmem:[#allocation2 + $0x20] sm:$0xff]
    %v59 = vld [vmem:[#allocation2 + $0x28] sm:$0xff]
    %v60 = vld [vmem:[#allocation2 + $0x30] sm:$0xff]
    %v61 = vld [vmem:[#allocation5] sm:$0xff]
    %v62 = vld [vmem:[#allocation5 + $0x8] sm:$0xff]
    %v63 = vld [vmem:[#allocation5 + $0x10] sm:$0xff]
    %v64 = vld [vmem:[#allocation5 + $0x18] sm:$0xff]
    %v65 = vld [vmem:[#allocation5 + $0x20] sm:$0xff]
    %v66 = vld [vmem:[#allocation5 + $0x28] sm:$0xff]
    %v67 = vld [vmem:[#allocation5 + $0x30] sm:$0xff]
    %v68 = vld [vmem:[#allocation5 + $0x38] sm:$0xff]
    %v69 = vld [vmem:[#allocation5 + $0x40] sm:$0xff]
    %v70 = vld [vmem:[#allocation5 + $0x48] sm:$0xff]
    %v71 = vld [vmem:[#allocation5 + $0x50] sm:$0xff]
    %v72 = vld [vmem:[#allocation5 + $0x58] sm:$0xff]
    %v73 = vld [vmem:[#allocation5 + $0x60] sm:$0xff]
    %v74 = vld [vmem:[#allocation5 + $0x68] sm:$0xff]
    %v75 = vld [vmem:[#allocation5 + $0x70] sm:$0xff]
    %v76 = vld [vmem:[#allocation5 + $0x78] sm:$0xff]
    %v77 = vld [vmem:[#allocation5 + $0x80] sm:$0xff]
    %v78 = vld [vmem:[#allocation5 + $0x88] sm:$0xff]
    %v79 = vld [vmem:[#allocation5 + $0x90] sm:$0xff]
    %v80 = vld [vmem:[#allocation5 + $0x98] sm:$0xff]
    %v81 = vld [vmem:[#allocation5 + $0xa0] sm:$0xff]
    %v82 = vld [vmem:[#allocation5 + $0xa8] sm:$0xff]
    %v83 = vld [vmem:[#allocation5 + $0xb0] sm:$0xff]
    %v84 = vld [vmem:[#allocation5 + $0xb8] sm:$0xff]
    %v85 = vld [vmem:[#allocation5 + $0xc0] sm:$0xff]
    %v86 = vld [vmem:[#allocation5 + $0xc8] sm:$0xff]
    %v87 = vld [vmem:[#allocation5 + $0xd0] sm:$0xff]
    %v88 = vld [vmem:[#allocation5 + $0xd8] sm:$0xff]
    %v89 = vld [vmem:[#allocation5 + $0xe0] sm:$0xff]
    %v90 = vld [vmem:[#allocation5 + $0xe8] sm:$0xff]
    %v91 = vld [vmem:[#allocation5 + $0xf0] sm:$0xff]
    %v92 = vld [vmem:[#allocation5 + $0xf8] sm:$0xff]
    %v93 = vld [vmem:[#allocation5 + $0x100] sm:$0xff]
    %v94 = vld [vmem:[#allocation5 + $0x108] sm:$0xff]
    %v95 = vld [vmem:[#allocation5 + $0x110] sm:$0xff]
    %v96 = vld [vmem:[#allocation5 + $0x118] sm:$0xff]
    %v97 = vld [vmem:[#allocation5 + $0x120] sm:$0xff]
    %v98 = vld [vmem:[#allocation5 + $0x128] sm:$0xff]
    %v99 = vld [vmem:[#allocation5 + $0x130] sm:$0xff]
    %v100 = vld [vmem:[#allocation5 + $0x138] sm:$0xff]
    %v101 = vld [vmem:[#allocation5 + $0x140] sm:$0xff]
    %v102 = vld [vmem:[#allocation5 + $0x148] sm:$0xff]
    %v103 = vld [vmem:[#allocation5 + $0x150] sm:$0xff]
    %v104 = vld [vmem:[#allocation5 + $0x158] sm:$0xff]
    %v105 = vld [vmem:[#allocation5 + $0x160] sm:$0xff]
    %v106 = vld [vmem:[#allocation5 + $0x168] sm:$0xff]
    %v107 = vld [vmem:[#allocation5 + $0x170] sm:$0xff]
    %v108 = vld [vmem:[#allocation5 + $0x178] sm:$0xff]
    %v109 = vld [vmem:[#allocation5 + $0x180] sm:$0xff]
    %v110 = vld [vmem:[#allocation5 + $0x188] sm:$0xff]
    %v111 = vld [vmem:[#allocation5 + $0x190] sm:$0xff]
    %v112 = vld [vmem:[#allocation5 + $0x198] sm:$0xff]
    %v113 = vld [vmem:[#allocation5 + $0x1a0] sm:$0xff]
    %v114 = vld [vmem:[#allocation5 + $0x1a8] sm:$0xff]
    %v115 = vld [vmem:[#allocation5 + $0x1b0] sm:$0xff]
    %v116 = vld [vmem:[#allocation5 + $0x1b8] sm:$0xff]
    %v117 = vld [vmem:[#allocation5 + $0x1c0] sm:$0xff]
    %v118 = vld [vmem:[#allocation5 + $0x1c8] sm:$0xff]
    %v119 = vld [vmem:[#allocation5 + $0x1d0] sm:$0xff]
    %v120 = vld [vmem:[#allocation5 + $0x1d8] sm:$0xff]
    %v121 = vld [vmem:[#allocation5 + $0x1e0] sm:$0xff]
    %v122 = vld [vmem:[#allocation5 + $0x1e8] sm:$0xff]
    %v123 = vld [vmem:[#allocation5 + $0x1f0] sm:$0xff]
    %v124 = vld [vmem:[#allocation5 + $0x1f8] sm:$0xff]
    %v125 = vld [vmem:[#allocation5 + $0x200] sm:$0xff]
    %v126 = vld [vmem:[#allocation5 + $0x208] sm:$0xff]
    %v127 = vld [vmem:[#allocation5 + $0x210] sm:$0xff]
    %v128 = vld [vmem:[#allocation5 + $0x218] sm:$0xff]
    %v129 = vld [vmem:[#allocation5 + $0x220] sm:$0xff]
    %v130 = vld [vmem:[#allocation5 + $0x228] sm:$0xff]
    %v131 = vld [vmem:[#allocation5 + $0x230] sm:$0xff]
    %v132 = vld [vmem:[#allocation5 + $0x238] sm:$0xff]
    %v133 = vld [vmem:[#allocation5 + $0x240] sm:$0xff]
    %v134 = vld [vmem:[#allocation5 + $0x248] sm:$0xff]
    %v135 = vld [vmem:[#allocation5 + $0x250] sm:$0xff]
    %v136 = vld [vmem:[#allocation5 + $0x258] sm:$0xff]
    %v137 = vld [vmem:[#allocation5 + $0x260] sm:$0xff]
    %v138 = vld [vmem:[#allocation5 + $0x268] sm:$0xff]
    %v139 = vld [vmem:[#allocation5 + $0x270] sm:$0xff]
    %v140 = vld [vmem:[#allocation5 + $0x278] sm:$0xff]
    %v141 = vld [vmem:[#allocation5 + $0x280] sm:$0xff]
    %v142 = vld [vmem:[#allocation5 + $0x288] sm:$0xff]
    %v143 = vld [vmem:[#allocation5 + $0x290] sm:$0xff]
    %v144 = vld [vmem:[#allocation5 + $0x298] sm:$0xff]
    %v145 = vld [vmem:[#allocation5 + $0x2a0] sm:$0xff]
    %v146 = vld [vmem:[#allocation5 + $0x2a8] sm:$0xff]
    %v147 = vld [vmem:[#allocation5 + $0x2b0] sm:$0xff]
    %v148 = vld [vmem:[#allocation5 + $0x2b8] sm:$0xff]
    %v149 = vld [vmem:[#allocation5 + $0x2c0] sm:$0xff]
    %v150 = vld [vmem:[#allocation5 + $0x2c8] sm:$0xff]
    %v151 = vld [vmem:[#allocation5 + $0x2d0] sm:$0xff]
    %v152 = vld [vmem:[#allocation5 + $0x2d8] sm:$0xff]
    %v153 = vld [vmem:[#allocation5 + $0x2e0] sm:$0xff]
    %v154 = vld [vmem:[#allocation5 + $0x2e8] sm:$0xff]
    %v155 = vld [vmem:[#allocation5 + $0x2f0] sm:$0xff]
    %v156 = vld [vmem:[#allocation5 + $0x2f8] sm:$0xff]
    %v157 = vld [vmem:[#allocation5 + $0x300] sm:$0xff]
    %v158 = vld [vmem:[#allocation5 + $0x308] sm:$0xff]
    %v159 = vld [vmem:[#allocation5 + $0x310] sm:$0xff]
    %v160 = vld [vmem:[#allocation5 + $0x318] sm:$0xff]
    %v161 = vld [vmem:[#allocation5 + $0x320] sm:$0xff]
    %v162 = vld [vmem:[#allocation5 + $0x328] sm:$0xff]
    %v163 = vld [vmem:[#allocation5 + $0x330] sm:$0xff]
    %v164 = vld [vmem:[#allocation5 + $0x338] sm:$0xff]
    %v165 = vld [vmem:[#allocation5 + $0x340] sm:$0xff]
    %v166 = vld [vmem:[#allocation5 + $0x348] sm:$0xff]
    %v167 = vld [vmem:[#allocation5 + $0x350] sm:$0xff]
    %v168 = vld [vmem:[#allocation5 + $0x358] sm:$0xff]
    %v169 = vld [vmem:[#allocation5 + $0x360] sm:$0xff]
    %v170 = vld [vmem:[#allocation5 + $0x368] sm:$0xff]
    %v171 = vld [vmem:[#allocation5 + $0x370] sm:$0xff]
    %v172 = vld [vmem:[#allocation5 + $0x378] sm:$0xff]
    %v173 = vld [vmem:[#allocation5 + $0x380] sm:$0xff]
    %v174 = vld [vmem:[#allocation5 + $0x388] sm:$0xff]
    %v175 = vld [vmem:[#allocation5 + $0x390] sm:$0xff]
    %v176 = vld [vmem:[#allocation5 + $0x398] sm:$0xff]
    %v177 = vld [vmem:[#allocation5 + $0x3a0] sm:$0xff]
    %v178 = vld [vmem:[#allocation5 + $0x3a8] sm:$0xff]
    %v179 = vld [vmem:[#allocation5 + $0x3b0] sm:$0xff]
    %v180 = vld [vmem:[#allocation5 + $0x3b8] sm:$0xff]
    %v181 = vld [vmem:[#allocation5 + $0x3c0] sm:$0xff]
    %v182 = vld [vmem:[#allocation5 + $0x3c8] sm:$0xff]
    %v183 = vld [vmem:[#allocation5 + $0x3d0] sm:$0xff]
    %v184 = vld [vmem:[#allocation5 + $0x3d8] sm:$0xff]
    %v185 = vld [vmem:[#allocation5 + $0x3e0] sm:$0xff]
    %v186 = vld [vmem:[#allocation5 + $0x3e8] sm:$0xff]
    %v187 = vld [vmem:[#allocation5 + $0x3f0] sm:$0xff]
    %v188 = vld [vmem:[#allocation5 + $0x3f8] sm:$0xff]
    %v189 = vld [vmem:[#allocation5 + $0x400] sm:$0xff]
    %v190 = vld [vmem:[#allocation5 + $0x408] sm:$0xff]
    %v191 = vld [vmem:[#allocation5 + $0x410] sm:$0xff]
    %v192 = vld [vmem:[#allocation5 + $0x418] sm:$0xff]
    %v193 = vld [vmem:[#allocation5 + $0x420] sm:$0xff]
    %v194 = vld [vmem:[#allocation5 + $0x428] sm:$0xff]
    %v195 = vld [vmem:[#allocation5 + $0x430] sm:$0xff]
    %v196 = vld [vmem:[#allocation5 + $0x438] sm:$0xff]
    %v197 = vld [vmem:[#allocation5 + $0x440] sm:$0xff]
    %v198 = vld [vmem:[#allocation5 + $0x448] sm:$0xff]
    %v199 = vld [vmem:[#allocation5 + $0x450] sm:$0xff]
    %v200 = vld [vmem:[#allocation5 + $0x458] sm:$0xff]
    %v201 = vld [vmem:[#allocation5 + $0x460] sm:$0xff]
    %v202 = vld [vmem:[#allocation5 + $0x468] sm:$0xff]
    %v203 = vld [vmem:[#allocation5 + $0x470] sm:$0xff]
    %v204 = vld [vmem:[#allocation5 + $0x478] sm:$0xff]
    %v205 = vld [vmem:[#allocation5 + $0x480] sm:$0xff]
    %v206 = vld [vmem:[#allocation5 + $0x488] sm:$0xff]
    %v207 = vld [vmem:[#allocation5 + $0x490] sm:$0xff]
    %v208 = vld [vmem:[#allocation5 + $0x498] sm:$0xff]
    %v209 = vld [vmem:[#allocation5 + $0x4a0] sm:$0xff]
    %v210 = vld [vmem:[#allocation5 + $0x4a8] sm:$0xff]
    %v211 = vld [vmem:[#allocation5 + $0x4b0] sm:$0xff]
    %v212 = vld [vmem:[#allocation5 + $0x4b8] sm:$0xff]
    %v213 = vld [vmem:[#allocation5 + $0x4c0] sm:$0xff]
    %v214 = vld [vmem:[#allocation5 + $0x4c8] sm:$0xff]
    %v215 = vld [vmem:[#allocation5 + $0x4d0] sm:$0xff]
    %v216 = vld [vmem:[#allocation5 + $0x4d8] sm:$0xff]
    %v217 = vld [vmem:[#allocation5 + $0x4e0] sm:$0xff]
    %v218 = vld [vmem:[#allocation5 + $0x4e8] sm:$0xff]
    %v219 = vld [vmem:[#allocation5 + $0x4f0] sm:$0xff]
    %v220 = vld [vmem:[#allocation5 + $0x4f8] sm:$0xff]
    %v221 = vld [vmem:[#allocation5 + $0x500] sm:$0xff]
    %v222 = vld [vmem:[#allocation5 + $0x508] sm:$0xff]
    %v223 = vld [vmem:[#allocation5 + $0x510] sm:$0xff]
    %v224 = vld [vmem:[#allocation5 + $0x518] sm:$0xff]
    %v225 = vld [vmem:[#allocation5 + $0x520] sm:$0xff]
    %v226 = vld [vmem:[#allocation5 + $0x528] sm:$0xff]
    %v227 = vld [vmem:[#allocation5 + $0x530] sm:$0xff]
    %v228 = vld [vmem:[#allocation5 + $0x538] sm:$0xff]
    %v229 = vld [vmem:[#allocation5 + $0x540] sm:$0xff]
    %v230 = vld [vmem:[#allocation5 + $0x548] sm:$0xff]
    %v231 = vld [vmem:[#allocation5 + $0x550] sm:$0xff]
    %v232 = vld [vmem:[#allocation5 + $0x558] sm:$0xff]
    %v233 = vld [vmem:[#allocation5 + $0x560] sm:$0xff]
    %v234 = vld [vmem:[#allocation5 + $0x568] sm:$0xff]
    %v235 = vld [vmem:[#allocation5 + $0x570] sm:$0xff]
    %v236 = vld [vmem:[#allocation5 + $0x578] sm:$0xff]
    %v237 = vld [vmem:[#allocation5 + $0x580] sm:$0xff]
    %v238 = vld [vmem:[#allocation5 + $0x588] sm:$0xff]
    %v239 = vld [vmem:[#allocation5 + $0x590] sm:$0xff]
    %v240 = vld [vmem:[#allocation5 + $0x598] sm:$0xff]
    %v241 = vld [vmem:[#allocation5 + $0x5a0] sm:$0xff]
    %v242 = vld [vmem:[#allocation5 + $0x5a8] sm:$0xff]
    %v243 = vld [vmem:[#allocation5 + $0x5b0] sm:$0xff]
    %v244 = vld [vmem:[#allocation5 + $0x5b8] sm:$0xff]
    %v245 = vld [vmem:[#allocation5 + $0x5c0] sm:$0xff]
    %v246 = vld [vmem:[#allocation5 + $0x5c8] sm:$0xff]
    %v247 = vld [vmem:[#allocation5 + $0x5d0] sm:$0xff]
    %v248 = vld [vmem:[#allocation5 + $0x5d8] sm:$0xff]
    %v249 = vld [vmem:[#allocation5 + $0x5e0] sm:$0xff]
    %v250 = vld [vmem:[#allocation5 + $0x5e8] sm:$0xff]
    %v251 = vld [vmem:[#allocation5 + $0x5f0] sm:$0xff]
    %v252 = vld [vmem:[#allocation5 + $0x5f8] sm:$0xff]
    %v253 = vld [vmem:[#allocation5 + $0x600] sm:$0xff]
    %v254 = vld [vmem:[#allocation5 + $0x608] sm:$0xff]
    %v255 = vld [vmem:[#allocation5 + $0x610] sm:$0xff]
    %v256 = vld [vmem:[#allocation5 + $0x618] sm:$0xff]
    %v257 = vld [vmem:[#allocation7] sm:$0x3]
    %v259 = vlaneseq
    %v260 = vshrl.u32 %v259, 7
    %v261 = vsub.s32 0, %v260
    %v262 = vrot.slane %v257, %v261
    %v263 = vlaneseq
    %v264 = vshrl.u32 %v263, 7
    %v265 = vsub.s32 1, %v264
    %v266 = vrot.slane %v257, %v265
    %vm269 = vcmask 130048
    %v271 = vsel %vm269, %v60, 0
    %273 = vmatprep.subr.mxu0 %v62
    %274 = vmatpush1.msra.mxu0 %v61
    %275 = vmatprep.subr.mxu0 %v64
    %276 = vmatpush1.msra.mxu0 %v63
    %277 = vmatprep.subr.mxu0 %v66
    %278 = vmatpush1.msra.mxu0 %v65
    %279 = vmatprep.subr.mxu0 %v68
    %280 = vmatpush1.msra.mxu0 %v67
    %281 = vmatprep.subr.mxu0 %v70
    %282 = vmatpush1.msra.mxu0 %v69
    %283 = vmatprep.subr.mxu0 %v72
    %284 = vmatpush1.msra.mxu0 %v71
    %285 = vmatprep.subr.mxu0 %v74
    %286 = vmatpush1.msra.mxu0 %v73
    %287 = vmatprep.subr.mxu0 %v76
    %288 = vmatpush1.msra.mxu0 %v75
    %289 = vmatprep.subr.mxu0 %v78
    %290 = vmatpush1.msra.mxu0 %v77
    %291 = vmatprep.subr.mxu0 %v80
    %292 = vmatpush1.msra.mxu0 %v79
    %293 = vmatprep.subr.mxu0 %v82
    %294 = vmatpush1.msra.mxu0 %v81
    %295 = vmatprep.subr.mxu0 %v84
    %296 = vmatpush1.msra.mxu0 %v83
    %297 = vmatprep.subr.mxu0 %v86
    %298 = vmatpush1.msra.mxu0 %v85
    %299 = vmatprep.subr.mxu0 %v88
    %300 = vmatpush1.msra.mxu0 %v87
    %301 = vmatprep.subr.mxu0 %v90
    %302 = vmatpush1.msra.mxu0 %v89
    %303 = vmatprep.subr.mxu0 %v92
    %304 = vmatpush1.msra.mxu0 %v91
    %305 = vmatprep.subr.mxu0 %v94
    %306 = vmatpush1.msra.mxu0 %v93
    %307 = vmatprep.subr.mxu0 %v96
    %308 = vmatpush1.msra.mxu0 %v95
    %309 = vmatprep.subr.mxu0 %v98
    %310 = vmatpush1.msra.mxu0 %v97
    %311 = vmatprep.subr.mxu0 %v100
    %312 = vmatpush1.msra.mxu0 %v99
    %313 = vmatprep.subr.mxu0 %v102
    %314 = vmatpush1.msra.mxu0 %v101
    %315 = vmatprep.subr.mxu0 %v104
    %316 = vmatpush1.msra.mxu0 %v103
    %317 = vmatprep.subr.mxu0 %v106
    %318 = vmatpush1.msra.mxu0 %v105
    %319 = vmatprep.subr.mxu0 %v108
    %320 = vmatpush1.msra.mxu0 %v107
    %321 = vmatprep.subr.mxu0 %v110
    %322 = vmatpush1.msra.mxu0 %v109
    %323 = vmatprep.subr.mxu0 %v112
    %324 = vmatpush1.msra.mxu0 %v111
    %325 = vmatprep.subr.mxu0 %v114
    %326 = vmatpush1.msra.mxu0 %v113
    %327 = vmatprep.subr.mxu0 %v116
    %328 = vmatpush1.msra.mxu0 %v115
    %329 = vmatprep.subr.mxu0 %v118
    %330 = vmatpush1.msra.mxu0 %v117
    %331 = vmatprep.subr.mxu0 %v120
    %332 = vmatpush1.msra.mxu0 %v119
    %333 = vmatprep.subr.mxu0 %v122
    %334 = vmatpush1.msra.mxu0 %v121
    %335 = vmatprep.subr.mxu0 %v124
    %336 = vmatpush1.msra.mxu0 %v123
    %337 = vmatprep.mubr.f32.mxu0 %v55
    %338 = vmatmul.mubr.f32.gmra.mrb[0].mxu0 %v54
    %v339 = vpop.f32.mrb[0].mxu0
    %v340 = vadd.f32 %v262, %v339
    %v341 = vpop.f32.mrb[0].mxu0
    %v342 = vadd.f32 %v266, %v341
    %343 = vdwg.mxu0
    %344 = vmatprep.subr.mxu0 %v126
    %345 = vmatpush1.msra.mxu0 %v125
    %346 = vmatprep.subr.mxu0 %v128
    %347 = vmatpush1.msra.mxu0 %v127
    %348 = vmatprep.subr.mxu0 %v130
    %349 = vmatpush1.msra.mxu0 %v129
    %350 = vmatprep.subr.mxu0 %v132
    %351 = vmatpush1.msra.mxu0 %v131
    %352 = vmatprep.subr.mxu0 %v134
    %353 = vmatpush1.msra.mxu0 %v133
    %354 = vmatprep.subr.mxu0 %v136
    %355 = vmatpush1.msra.mxu0 %v135
    %356 = vmatprep.subr.mxu0 %v138
    %357 = vmatpush1.msra.mxu0 %v137
    %358 = vmatprep.subr.mxu0 %v140
    %359 = vmatpush1.msra.mxu0 %v139
    %360 = vmatprep.subr.mxu0 %v142
    %361 = vmatpush1.msra.mxu0 %v141
    %362 = vmatprep.subr.mxu0 %v144
    %363 = vmatpush1.msra.mxu0 %v143
    %364 = vmatprep.subr.mxu0 %v146
    %365 = vmatpush1.msra.mxu0 %v145
    %366 = vmatprep.subr.mxu0 %v148
    %367 = vmatpush1.msra.mxu0 %v147
    %368 = vmatprep.subr.mxu0 %v150
    %369 = vmatpush1.msra.mxu0 %v149
    %370 = vmatprep.subr.mxu0 %v152
    %371 = vmatpush1.msra.mxu0 %v151
    %372 = vmatprep.subr.mxu0 %v154
    %373 = vmatpush1.msra.mxu0 %v153
    %374 = vmatprep.subr.mxu0 %v156
    %375 = vmatpush1.msra.mxu0 %v155
    %376 = vmatprep.subr.mxu0 %v158
    %377 = vmatpush1.msra.mxu0 %v157
    %378 = vmatprep.subr.mxu0 %v160
    %379 = vmatpush1.msra.mxu0 %v159
    %380 = vmatprep.subr.mxu0 %v162
    %381 = vmatpush1.msra.mxu0 %v161
    %382 = vmatprep.subr.mxu0 %v164
    %383 = vmatpush1.msra.mxu0 %v163
    %384 = vmatprep.subr.mxu0 %v166
    %385 = vmatpush1.msra.mxu0 %v165
    %386 = vmatprep.subr.mxu0 %v168
    %387 = vmatpush1.msra.mxu0 %v167
    %388 = vmatprep.subr.mxu0 %v170
    %389 = vmatpush1.msra.mxu0 %v169
    %390 = vmatprep.subr.mxu0 %v172
    %391 = vmatpush1.msra.mxu0 %v171
    %392 = vmatprep.subr.mxu0 %v174
    %393 = vmatpush1.msra.mxu0 %v173
    %394 = vmatprep.subr.mxu0 %v176
    %395 = vmatpush1.msra.mxu0 %v175
    %396 = vmatprep.subr.mxu0 %v178
    %397 = vmatpush1.msra.mxu0 %v177
    %398 = vmatprep.subr.mxu0 %v180
    %399 = vmatpush1.msra.mxu0 %v179
    %400 = vmatprep.subr.mxu0 %v182
    %401 = vmatpush1.msra.mxu0 %v181
    %402 = vmatprep.subr.mxu0 %v184
    %403 = vmatpush1.msra.mxu0 %v183
    %404 = vmatprep.subr.mxu0 %v186
    %405 = vmatpush1.msra.mxu0 %v185
    %406 = vmatprep.subr.mxu0 %v188
    %407 = vmatpush1.msra.mxu0 %v187
    %408 = vmatprep.mubr.f32.mxu0 %v57
    %409 = vmatmul.mubr.f32.gmra.mrb[0].mxu0 %v56
    %v410 = vpop.f32.mrb[0].mxu0
    %v411 = vadd.f32 %v340, %v410
    %v412 = vpop.f32.mrb[0].mxu0
    %v413 = vadd.f32 %v342, %v412
    %414 = vdwg.mxu0
    %415 = vmatprep.subr.mxu0 %v190
    %416 = vmatpush1.msra.mxu0 %v189
    %417 = vmatprep.subr.mxu0 %v192
    %418 = vmatpush1.msra.mxu0 %v191
    %419 = vmatprep.subr.mxu0 %v194
    %420 = vmatpush1.msra.mxu0 %v193
    %421 = vmatprep.subr.mxu0 %v196
    %422 = vmatpush1.msra.mxu0 %v195
    %423 = vmatprep.subr.mxu0 %v198
    %424 = vmatpush1.msra.mxu0 %v197
    %425 = vmatprep.subr.mxu0 %v200
    %426 = vmatpush1.msra.mxu0 %v199
    %427 = vmatprep.subr.mxu0 %v202
    %428 = vmatpush1.msra.mxu0 %v201
    %429 = vmatprep.subr.mxu0 %v204
    %430 = vmatpush1.msra.mxu0 %v203
    %431 = vmatprep.subr.mxu0 %v206
    %432 = vmatpush1.msra.mxu0 %v205
    %433 = vmatprep.subr.mxu0 %v208
    %434 = vmatpush1.msra.mxu0 %v207
    %435 = vmatprep.subr.mxu0 %v210
    %436 = vmatpush1.msra.mxu0 %v209
    %437 = vmatprep.subr.mxu0 %v212
    %438 = vmatpush1.msra.mxu0 %v211
    %439 = vmatprep.subr.mxu0 %v214
    %440 = vmatpush1.msra.mxu0 %v213
    %441 = vmatprep.subr.mxu0 %v216
    %442 = vmatpush1.msra.mxu0 %v215
    %443 = vmatprep.subr.mxu0 %v218
    %444 = vmatpush1.msra.mxu0 %v217
    %445 = vmatprep.subr.mxu0 %v220
    %446 = vmatpush1.msra.mxu0 %v219
    %447 = vmatprep.subr.mxu0 %v222
    %448 = vmatpush1.msra.mxu0 %v221
    %449 = vmatprep.subr.mxu0 %v224
    %450 = vmatpush1.msra.mxu0 %v223
    %451 = vmatprep.subr.mxu0 %v226
    %452 = vmatpush1.msra.mxu0 %v225
    %453 = vmatprep.subr.mxu0 %v228
    %454 = vmatpush1.msra.mxu0 %v227
    %455 = vmatprep.subr.mxu0 %v230
    %456 = vmatpush1.msra.mxu0 %v229
    %457 = vmatprep.subr.mxu0 %v232
    %458 = vmatpush1.msra.mxu0 %v231
    %459 = vmatprep.subr.mxu0 %v234
    %460 = vmatpush1.msra.mxu0 %v233
    %461 = vmatprep.subr.mxu0 %v236
    %462 = vmatpush1.msra.mxu0 %v235
    %463 = vmatprep.subr.mxu0 %v238
    %464 = vmatpush1.msra.mxu0 %v237
    %465 = vmatprep.subr.mxu0 %v240
    %466 = vmatpush1.msra.mxu0 %v239
    %467 = vmatprep.subr.mxu0 %v242
    %468 = vmatpush1.msra.mxu0 %v241
    %469 = vmatprep.subr.mxu0 %v244
    %470 = vmatpush1.msra.mxu0 %v243
    %471 = vmatprep.subr.mxu0 %v246
    %472 = vmatpush1.msra.mxu0 %v245
    %473 = vmatprep.subr.mxu0 %v248
    %474 = vmatpush1.msra.mxu0 %v247
    %475 = vmatprep.subr.mxu0 %v250
    %476 = vmatpush1.msra.mxu0 %v249
    %477 = vmatprep.subr.mxu0 %v252
    %478 = vmatpush1.msra.mxu0 %v251
    %479 = vmatprep.mubr.f32.mxu0 %v59
    %480 = vmatmul.mubr.f32.gmra.mrb[0].mxu0 %v58
    %v481 = vpop.f32.mrb[0].mxu0
    %v482 = vadd.f32 %v411, %v481
    %v483 = vpop.f32.mrb[0].mxu0
    %v484 = vadd.f32 %v413, %v483
    %485 = vdwg.mxu0
    %486 = vmatprep.subr.mxu0 %v254
    %487 = vmatpush1.msra.mxu0 %v253
    %488 = vmatprep.subr.mxu0 %v256
    %489 = vmatpush1.msra.mxu0 %v255
    %490 = vmatprep.subr.mxu0 0.0
    %491 = vmatpush1.msra.mxu0 0.0
    %492 = vmatprep.subr.mxu0 0.0
    %493 = vmatpush1.msra.mxu0 0.0
    %494 = vmatprep.subr.mxu0 0.0
    %495 = vmatpush1.msra.mxu0 0.0
    %496 = vmatprep.subr.mxu0 0.0
    %497 = vmatpush1.msra.mxu0 0.0
    %498 = vmatprep.subr.mxu0 0.0
    %499 = vmatpush1.msra.mxu0 0.0
    %500 = vmatprep.subr.mxu0 0.0
    %501 = vmatpush1.msra.mxu0 0.0
    %502 = vmatprep.subr.mxu0 0.0
    %503 = vmatpush1.msra.mxu0 0.0
    %504 = vmatprep.subr.mxu0 0.0
    %505 = vmatpush1.msra.mxu0 0.0
    %506 = vmatprep.subr.mxu0 0.0
    %507 = vmatpush1.msra.mxu0 0.0
    %508 = vmatprep.subr.mxu0 0.0
    %509 = vmatpush1.msra.mxu0 0.0
    %510 = vmatprep.subr.mxu0 0.0
    %511 = vmatpush1.msra.mxu0 0.0
    %512 = vmatprep.subr.mxu0 0.0
    %513 = vmatpush1.msra.mxu0 0.0
    %514 = vmatprep.subr.mxu0 0.0
    %515 = vmatpush1.msra.mxu0 0.0
    %516 = vmatprep.subr.mxu0 0.0
    %517 = vmatpush1.msra.mxu0 0.0
    %518 = vmatprep.subr.mxu0 0.0
    %519 = vmatpush1.msra.mxu0 0.0
    %520 = vmatprep.subr.mxu0 0.0
    %521 = vmatpush1.msra.mxu0 0.0
    %522 = vmatprep.subr.mxu0 0.0
    %523 = vmatpush1.msra.mxu0 0.0
    %524 = vmatprep.subr.mxu0 0.0
    %525 = vmatpush1.msra.mxu0 0.0
    %526 = vmatprep.subr.mxu0 0.0
    %527 = vmatpush1.msra.mxu0 0.0
    %528 = vmatprep.subr.mxu0 0.0
    %529 = vmatpush1.msra.mxu0 0.0
    %530 = vmatprep.subr.mxu0 0.0
    %531 = vmatpush1.msra.mxu0 0.0
    %532 = vmatprep.subr.mxu0 0.0
    %533 = vmatpush1.msra.mxu0 0.0
    %534 = vmatprep.subr.mxu0 0.0
    %535 = vmatpush1.msra.mxu0 0.0
    %536 = vmatprep.subr.mxu0 0.0
    %537 = vmatpush1.msra.mxu0 0.0
    %538 = vmatprep.subr.mxu0 0.0
    %539 = vmatpush1.msra.mxu0 0.0
    %540 = vmatprep.subr.mxu0 0.0
    %541 = vmatpush1.msra.mxu0 0.0
    %542 = vmatprep.subr.mxu0 0.0
    %543 = vmatpush1.msra.mxu0 0.0
    %544 = vmatprep.subr.mxu0 0.0
    %545 = vmatpush1.msra.mxu0 0.0
    %546 = vmatprep.subr.mxu0 0.0
    %547 = vmatpush1.msra.mxu0 0.0
    %548 = vmatprep.subr.mxu0 0.0
    %549 = vmatpush1.msra.mxu0 0.0
    %550 = vmatprep.mubr.f32.mxu0 0.0
    %551 = vmatmul.mubr.f32.gmra.mrb[0].mxu0 %v271
    %v552 = vpop.f32.mrb[0].mxu0
    %v553 = vadd.f32 %v482, %v552
    %v554 = vpop.f32.mrb[0].mxu0
    %v555 = vadd.f32 %v484, %v554
    %556 = vdwg.mxu0
    %s557 = scalar_lea.vmem [#allocation5], 1568
    %v558 = vld [vmem:[%s557] sm:$0xff]
    %v559 = vld [vmem:[%s557 + $0x8] sm:$0xff]
    %v560 = vld [vmem:[%s557 + $0x10] sm:$0xff]
    %v561 = vld [vmem:[%s557 + $0x18] sm:$0xff]
    %v562 = vld [vmem:[%s557 + $0x20] sm:$0xff]
    %v563 = vld [vmem:[%s557 + $0x28] sm:$0xff]
    %v564 = vld [vmem:[%s557 + $0x30] sm:$0xff]
    %v565 = vld [vmem:[%s557 + $0x38] sm:$0xff]
    %v566 = vld [vmem:[%s557 + $0x40] sm:$0xff]
    %v567 = vld [vmem:[%s557 + $0x48] sm:$0xff]
    %v568 = vld [vmem:[%s557 + $0x50] sm:$0xff]
    %v569 = vld [vmem:[%s557 + $0x58] sm:$0xff]
    %v570 = vld [vmem:[%s557 + $0x60] sm:$0xff]
    %v571 = vld [vmem:[%s557 + $0x68] sm:$0xff]
    %v572 = vld [vmem:[%s557 + $0x70] sm:$0xff]
    %v573 = vld [vmem:[%s557 + $0x78] sm:$0xff]
    %v574 = vld [vmem:[%s557 + $0x80] sm:$0xff]
    %v575 = vld [vmem:[%s557 + $0x88] sm:$0xff]
    %v576 = vld [vmem:[%s557 + $0x90] sm:$0xff]
    %v577 = vld [vmem:[%s557 + $0x98] sm:$0xff]
    %v578 = vld [vmem:[%s557 + $0xa0] sm:$0xff]
    %v579 = vld [vmem:[%s557 + $0xa8] sm:$0xff]
    %v580 = vld [vmem:[%s557 + $0xb0] sm:$0xff]
    %v581 = vld [vmem:[%s557 + $0xb8] sm:$0xff]
    %v582 = vld [vmem:[%s557 + $0xc0] sm:$0xff]
    %v583 = vld [vmem:[%s557 + $0xc8] sm:$0xff]
    %v584 = vld [vmem:[%s557 + $0xd0] sm:$0xff]
    %v585 = vld [vmem:[%s557 + $0xd8] sm:$0xff]
    %v586 = vld [vmem:[%s557 + $0xe0] sm:$0xff]
    %v587 = vld [vmem:[%s557 + $0xe8] sm:$0xff]
    %v588 = vld [vmem:[%s557 + $0xf0] sm:$0xff]
    %v589 = vld [vmem:[%s557 + $0xf8] sm:$0xff]
    %v590 = vld [vmem:[%s557 + $0x100] sm:$0xff]
    %v591 = vld [vmem:[%s557 + $0x108] sm:$0xff]
    %v592 = vld [vmem:[%s557 + $0x110] sm:$0xff]
    %v593 = vld [vmem:[%s557 + $0x118] sm:$0xff]
    %v594 = vld [vmem:[%s557 + $0x120] sm:$0xff]
    %v595 = vld [vmem:[%s557 + $0x128] sm:$0xff]
    %v596 = vld [vmem:[%s557 + $0x130] sm:$0xff]
    %v597 = vld [vmem:[%s557 + $0x138] sm:$0xff]
    %v598 = vld [vmem:[%s557 + $0x140] sm:$0xff]
    %v599 = vld [vmem:[%s557 + $0x148] sm:$0xff]
    %v600 = vld [vmem:[%s557 + $0x150] sm:$0xff]
    %v601 = vld [vmem:[%s557 + $0x158] sm:$0xff]
    %v602 = vld [vmem:[%s557 + $0x160] sm:$0xff]
    %v603 = vld [vmem:[%s557 + $0x168] sm:$0xff]
    %v604 = vld [vmem:[%s557 + $0x170] sm:$0xff]
    %v605 = vld [vmem:[%s557 + $0x178] sm:$0xff]
    %v606 = vld [vmem:[%s557 + $0x180] sm:$0xff]
    %v607 = vld [vmem:[%s557 + $0x188] sm:$0xff]
    %v608 = vld [vmem:[%s557 + $0x190] sm:$0xff]
    %v609 = vld [vmem:[%s557 + $0x198] sm:$0xff]
    %v610 = vld [vmem:[%s557 + $0x1a0] sm:$0xff]
    %v611 = vld [vmem:[%s557 + $0x1a8] sm:$0xff]
    %v612 = vld [vmem:[%s557 + $0x1b0] sm:$0xff]
    %v613 = vld [vmem:[%s557 + $0x1b8] sm:$0xff]
    %v614 = vld [vmem:[%s557 + $0x1c0] sm:$0xff]
    %v615 = vld [vmem:[%s557 + $0x1c8] sm:$0xff]
    %v616 = vld [vmem:[%s557 + $0x1d0] sm:$0xff]
    %v617 = vld [vmem:[%s557 + $0x1d8] sm:$0xff]
    %v618 = vld [vmem:[%s557 + $0x1e0] sm:$0xff]
    %v619 = vld [vmem:[%s557 + $0x1e8] sm:$0xff]
    %v620 = vld [vmem:[%s557 + $0x1f0] sm:$0xff]
    %v621 = vld [vmem:[%s557 + $0x1f8] sm:$0xff]
    %v622 = vld [vmem:[%s557 + $0x200] sm:$0xff]
    %v623 = vld [vmem:[%s557 + $0x208] sm:$0xff]
    %v624 = vld [vmem:[%s557 + $0x210] sm:$0xff]
    %v625 = vld [vmem:[%s557 + $0x218] sm:$0xff]
    %v626 = vld [vmem:[%s557 + $0x220] sm:$0xff]
    %v627 = vld [vmem:[%s557 + $0x228] sm:$0xff]
    %v628 = vld [vmem:[%s557 + $0x230] sm:$0xff]
    %v629 = vld [vmem:[%s557 + $0x238] sm:$0xff]
    %v630 = vld [vmem:[%s557 + $0x240] sm:$0xff]
    %v631 = vld [vmem:[%s557 + $0x248] sm:$0xff]
    %v632 = vld [vmem:[%s557 + $0x250] sm:$0xff]
    %v633 = vld [vmem:[%s557 + $0x258] sm:$0xff]
    %v634 = vld [vmem:[%s557 + $0x260] sm:$0xff]
    %v635 = vld [vmem:[%s557 + $0x268] sm:$0xff]
    %v636 = vld [vmem:[%s557 + $0x270] sm:$0xff]
    %v637 = vld [vmem:[%s557 + $0x278] sm:$0xff]
    %v638 = vld [vmem:[%s557 + $0x280] sm:$0xff]
    %v639 = vld [vmem:[%s557 + $0x288] sm:$0xff]
    %v640 = vld [vmem:[%s557 + $0x290] sm:$0xff]
    %v641 = vld [vmem:[%s557 + $0x298] sm:$0xff]
    %v642 = vld [vmem:[%s557 + $0x2a0] sm:$0xff]
    %v643 = vld [vmem:[%s557 + $0x2a8] sm:$0xff]
    %v644 = vld [vmem:[%s557 + $0x2b0] sm:$0xff]
    %v645 = vld [vmem:[%s557 + $0x2b8] sm:$0xff]
    %v646 = vld [vmem:[%s557 + $0x2c0] sm:$0xff]
    %v647 = vld [vmem:[%s557 + $0x2c8] sm:$0xff]
    %v648 = vld [vmem:[%s557 + $0x2d0] sm:$0xff]
    %v649 = vld [vmem:[%s557 + $0x2d8] sm:$0xff]
    %v650 = vld [vmem:[%s557 + $0x2e0] sm:$0xff]
    %v651 = vld [vmem:[%s557 + $0x2e8] sm:$0xff]
    %v652 = vld [vmem:[%s557 + $0x2f0] sm:$0xff]
    %v653 = vld [vmem:[%s557 + $0x2f8] sm:$0xff]
    %v654 = vld [vmem:[%s557 + $0x300] sm:$0xff]
    %v655 = vld [vmem:[%s557 + $0x308] sm:$0xff]
    %v656 = vld [vmem:[%s557 + $0x310] sm:$0xff]
    %v657 = vld [vmem:[%s557 + $0x318] sm:$0xff]
    %v658 = vld [vmem:[%s557 + $0x320] sm:$0xff]
    %v659 = vld [vmem:[%s557 + $0x328] sm:$0xff]
    %v660 = vld [vmem:[%s557 + $0x330] sm:$0xff]
    %v661 = vld [vmem:[%s557 + $0x338] sm:$0xff]
    %v662 = vld [vmem:[%s557 + $0x340] sm:$0xff]
    %v663 = vld [vmem:[%s557 + $0x348] sm:$0xff]
    %v664 = vld [vmem:[%s557 + $0x350] sm:$0xff]
    %v665 = vld [vmem:[%s557 + $0x358] sm:$0xff]
    %v666 = vld [vmem:[%s557 + $0x360] sm:$0xff]
    %v667 = vld [vmem:[%s557 + $0x368] sm:$0xff]
    %v668 = vld [vmem:[%s557 + $0x370] sm:$0xff]
    %v669 = vld [vmem:[%s557 + $0x378] sm:$0xff]
    %v670 = vld [vmem:[%s557 + $0x380] sm:$0xff]
    %v671 = vld [vmem:[%s557 + $0x388] sm:$0xff]
    %v672 = vld [vmem:[%s557 + $0x390] sm:$0xff]
    %v673 = vld [vmem:[%s557 + $0x398] sm:$0xff]
    %v674 = vld [vmem:[%s557 + $0x3a0] sm:$0xff]
    %v675 = vld [vmem:[%s557 + $0x3a8] sm:$0xff]
    %v676 = vld [vmem:[%s557 + $0x3b0] sm:$0xff]
    %v677 = vld [vmem:[%s557 + $0x3b8] sm:$0xff]
    %v678 = vld [vmem:[%s557 + $0x3c0] sm:$0xff]
    %v679 = vld [vmem:[%s557 + $0x3c8] sm:$0xff]
    %v680 = vld [vmem:[%s557 + $0x3d0] sm:$0xff]
    %v681 = vld [vmem:[%s557 + $0x3d8] sm:$0xff]
    %v682 = vld [vmem:[%s557 + $0x3e0] sm:$0xff]
    %v683 = vld [vmem:[%s557 + $0x3e8] sm:$0xff]
    %v684 = vld [vmem:[%s557 + $0x3f0] sm:$0xff]
    %v685 = vld [vmem:[%s557 + $0x3f8] sm:$0xff]
    %v686 = vld [vmem:[%s557 + $0x400] sm:$0xff]
    %v687 = vld [vmem:[%s557 + $0x408] sm:$0xff]
    %v688 = vld [vmem:[%s557 + $0x410] sm:$0xff]
    %v689 = vld [vmem:[%s557 + $0x418] sm:$0xff]
    %v690 = vld [vmem:[%s557 + $0x420] sm:$0xff]
    %v691 = vld [vmem:[%s557 + $0x428] sm:$0xff]
    %v692 = vld [vmem:[%s557 + $0x430] sm:$0xff]
    %v693 = vld [vmem:[%s557 + $0x438] sm:$0xff]
    %v694 = vld [vmem:[%s557 + $0x440] sm:$0xff]
    %v695 = vld [vmem:[%s557 + $0x448] sm:$0xff]
    %v696 = vld [vmem:[%s557 + $0x450] sm:$0xff]
    %v697 = vld [vmem:[%s557 + $0x458] sm:$0xff]
    %v698 = vld [vmem:[%s557 + $0x460] sm:$0xff]
    %v699 = vld [vmem:[%s557 + $0x468] sm:$0xff]
    %v700 = vld [vmem:[%s557 + $0x470] sm:$0xff]
    %v701 = vld [vmem:[%s557 + $0x478] sm:$0xff]
    %v702 = vld [vmem:[%s557 + $0x480] sm:$0xff]
    %v703 = vld [vmem:[%s557 + $0x488] sm:$0xff]
    %v704 = vld [vmem:[%s557 + $0x490] sm:$0xff]
    %v705 = vld [vmem:[%s557 + $0x498] sm:$0xff]
    %v706 = vld [vmem:[%s557 + $0x4a0] sm:$0xff]
    %v707 = vld [vmem:[%s557 + $0x4a8] sm:$0xff]
    %v708 = vld [vmem:[%s557 + $0x4b0] sm:$0xff]
    %v709 = vld [vmem:[%s557 + $0x4b8] sm:$0xff]
    %v710 = vld [vmem:[%s557 + $0x4c0] sm:$0xff]
    %v711 = vld [vmem:[%s557 + $0x4c8] sm:$0xff]
    %v712 = vld [vmem:[%s557 + $0x4d0] sm:$0xff]
    %v713 = vld [vmem:[%s557 + $0x4d8] sm:$0xff]
    %v714 = vld [vmem:[%s557 + $0x4e0] sm:$0xff]
    %v715 = vld [vmem:[%s557 + $0x4e8] sm:$0xff]
    %v716 = vld [vmem:[%s557 + $0x4f0] sm:$0xff]
    %v717 = vld [vmem:[%s557 + $0x4f8] sm:$0xff]
    %v718 = vld [vmem:[%s557 + $0x500] sm:$0xff]
    %v719 = vld [vmem:[%s557 + $0x508] sm:$0xff]
    %v720 = vld [vmem:[%s557 + $0x510] sm:$0xff]
    %v721 = vld [vmem:[%s557 + $0x518] sm:$0xff]
    %v722 = vld [vmem:[%s557 + $0x520] sm:$0xff]
    %v723 = vld [vmem:[%s557 + $0x528] sm:$0xff]
    %v724 = vld [vmem:[%s557 + $0x530] sm:$0xff]
    %v725 = vld [vmem:[%s557 + $0x538] sm:$0xff]
    %v726 = vld [vmem:[%s557 + $0x540] sm:$0xff]
    %v727 = vld [vmem:[%s557 + $0x548] sm:$0xff]
    %v728 = vld [vmem:[%s557 + $0x550] sm:$0xff]
    %v729 = vld [vmem:[%s557 + $0x558] sm:$0xff]
    %v730 = vld [vmem:[%s557 + $0x560] sm:$0xff]
    %v731 = vld [vmem:[%s557 + $0x568] sm:$0xff]
    %v732 = vld [vmem:[%s557 + $0x570] sm:$0xff]
    %v733 = vld [vmem:[%s557 + $0x578] sm:$0xff]
    %v734 = vld [vmem:[%s557 + $0x580] sm:$0xff]
    %v735 = vld [vmem:[%s557 + $0x588] sm:$0xff]
    %v736 = vld [vmem:[%s557 + $0x590] sm:$0xff]
    %v737 = vld [vmem:[%s557 + $0x598] sm:$0xff]
    %v738 = vld [vmem:[%s557 + $0x5a0] sm:$0xff]
    %v739 = vld [vmem:[%s557 + $0x5a8] sm:$0xff]
    %v740 = vld [vmem:[%s557 + $0x5b0] sm:$0xff]
    %v741 = vld [vmem:[%s557 + $0x5b8] sm:$0xff]
    %v742 = vld [vmem:[%s557 + $0x5c0] sm:$0xff]
    %v743 = vld [vmem:[%s557 + $0x5c8] sm:$0xff]
    %v744 = vld [vmem:[%s557 + $0x5d0] sm:$0xff]
    %v745 = vld [vmem:[%s557 + $0x5d8] sm:$0xff]
    %v746 = vld [vmem:[%s557 + $0x5e0] sm:$0xff]
    %v747 = vld [vmem:[%s557 + $0x5e8] sm:$0xff]
    %v748 = vld [vmem:[%s557 + $0x5f0] sm:$0xff]
    %v749 = vld [vmem:[%s557 + $0x5f8] sm:$0xff]
    %v750 = vld [vmem:[%s557 + $0x600] sm:$0xff]
    %v751 = vld [vmem:[%s557 + $0x608] sm:$0xff]
    %v752 = vld [vmem:[%s557 + $0x610] sm:$0xff]
    %v753 = vld [vmem:[%s557 + $0x618] sm:$0xff]
    %s754 = scalar_lea.vmem [#allocation7], 2
    %v755 = vld [vmem:[%s754] sm:$0x3]
    %v757 = vlaneseq
    %v758 = vshrl.u32 %v757, 7
    %v759 = vsub.s32 0, %v758
    %v760 = vrot.slane %v755, %v759
    %v761 = vlaneseq
    %v762 = vshrl.u32 %v761, 7
    %v763 = vsub.s32 1, %v762
    %v764 = vrot.slane %v755, %v763
    %767 = vmatprep.subr.mxu0 %v559
    %768 = vmatpush1.msra.mxu0 %v558
    %769 = vmatprep.subr.mxu0 %v561
    %770 = vmatpush1.msra.mxu0 %v560
    %771 = vmatprep.subr.mxu0 %v563
    %772 = vmatpush1.msra.mxu0 %v562
    %773 = vmatprep.subr.mxu0 %v565
    %774 = vmatpush1.msra.mxu0 %v564
    %775 = vmatprep.subr.mxu0 %v567
    %776 = vmatpush1.msra.mxu0 %v566
    %777 = vmatprep.subr.mxu0 %v569
    %778 = vmatpush1.msra.mxu0 %v568
    %779 = vmatprep.subr.mxu0 %v571
    %780 = vmatpush1.msra.mxu0 %v570
    %781 = vmatprep.subr.mxu0 %v573
    %782 = vmatpush1.msra.mxu0 %v572
    %783 = vmatprep.subr.mxu0 %v575
    %784 = vmatpush1.msra.mxu0 %v574
    %785 = vmatprep.subr.mxu0 %v577
    %786 = vmatpush1.msra.mxu0 %v576
    %787 = vmatprep.subr.mxu0 %v579
    %788 = vmatpush1.msra.mxu0 %v578
    %789 = vmatprep.subr.mxu0 %v581
    %790 = vmatpush1.msra.mxu0 %v580
    %791 = vmatprep.subr.mxu0 %v583
    %792 = vmatpush1.msra.mxu0 %v582
    %793 = vmatprep.subr.mxu0 %v585
    %794 = vmatpush1.msra.mxu0 %v584
    %795 = vmatprep.subr.mxu0 %v587
    %796 = vmatpush1.msra.mxu0 %v586
    %797 = vmatprep.subr.mxu0 %v589
    %798 = vmatpush1.msra.mxu0 %v588
    %799 = vmatprep.subr.mxu0 %v591
    %800 = vmatpush1.msra.mxu0 %v590
    %801 = vmatprep.subr.mxu0 %v593
    %802 = vmatpush1.msra.mxu0 %v592
    %803 = vmatprep.subr.mxu0 %v595
    %804 = vmatpush1.msra.mxu0 %v594
    %805 = vmatprep.subr.mxu0 %v597
    %806 = vmatpush1.msra.mxu0 %v596
    %807 = vmatprep.subr.mxu0 %v599
    %808 = vmatpush1.msra.mxu0 %v598
    %809 = vmatprep.subr.mxu0 %v601
    %810 = vmatpush1.msra.mxu0 %v600
    %811 = vmatprep.subr.mxu0 %v603
    %812 = vmatpush1.msra.mxu0 %v602
    %813 = vmatprep.subr.mxu0 %v605
    %814 = vmatpush1.msra.mxu0 %v604
    %815 = vmatprep.subr.mxu0 %v607
    %816 = vmatpush1.msra.mxu0 %v606
    %817 = vmatprep.subr.mxu0 %v609
    %818 = vmatpush1.msra.mxu0 %v608
    %819 = vmatprep.subr.mxu0 %v611
    %820 = vmatpush1.msra.mxu0 %v610
    %821 = vmatprep.subr.mxu0 %v613
    %822 = vmatpush1.msra.mxu0 %v612
    %823 = vmatprep.subr.mxu0 %v615
    %824 = vmatpush1.msra.mxu0 %v614
    %825 = vmatprep.subr.mxu0 %v617
    %826 = vmatpush1.msra.mxu0 %v616
    %827 = vmatprep.subr.mxu0 %v619
    %828 = vmatpush1.msra.mxu0 %v618
    %829 = vmatprep.subr.mxu0 %v621
    %830 = vmatpush1.msra.mxu0 %v620
    %831 = vmatprep.mubr.f32.mxu0 %v55
    %832 = vmatmul.mubr.f32.gmra.mrb[0].mxu0 %v54
    %v833 = vpop.f32.mrb[0].mxu0
    %v834 = vadd.f32 %v760, %v833
    %v835 = vpop.f32.mrb[0].mxu0
    %v836 = vadd.f32 %v764, %v835
    %837 = vdwg.mxu0
    %838 = vmatprep.subr.mxu0 %v623
    %839 = vmatpush1.msra.mxu0 %v622
    %840 = vmatprep.subr.mxu0 %v625
    %841 = vmatpush1.msra.mxu0 %v624
    %842 = vmatprep.subr.mxu0 %v627
    %843 = vmatpush1.msra.mxu0 %v626
    %844 = vmatprep.subr.mxu0 %v629
    %845 = vmatpush1.msra.mxu0 %v628
    %846 = vmatprep.subr.mxu0 %v631
    %847 = vmatpush1.msra.mxu0 %v630
    %848 = vmatprep.subr.mxu0 %v633
    %849 = vmatpush1.msra.mxu0 %v632
    %850 = vmatprep.subr.mxu0 %v635
    %851 = vmatpush1.msra.mxu0 %v634
    %852 = vmatprep.subr.mxu0 %v637
    %853 = vmatpush1.msra.mxu0 %v636
    %854 = vmatprep.subr.mxu0 %v639
    %855 = vmatpush1.msra.mxu0 %v638
    %856 = vmatprep.subr.mxu0 %v641
    %857 = vmatpush1.msra.mxu0 %v640
    %858 = vmatprep.subr.mxu0 %v643
    %859 = vmatpush1.msra.mxu0 %v642
    %860 = vmatprep.subr.mxu0 %v645
    %861 = vmatpush1.msra.mxu0 %v644
    %862 = vmatprep.subr.mxu0 %v647
    %863 = vmatpush1.msra.mxu0 %v646
    %864 = vmatprep.subr.mxu0 %v649
    %865 = vmatpush1.msra.mxu0 %v648
    %866 = vmatprep.subr.mxu0 %v651
    %867 = vmatpush1.msra.mxu0 %v650
    %868 = vmatprep.subr.mxu0 %v653
    %869 = vmatpush1.msra.mxu0 %v652
    %870 = vmatprep.subr.mxu0 %v655
    %871 = vmatpush1.msra.mxu0 %v654
    %872 = vmatprep.subr.mxu0 %v657
    %873 = vmatpush1.msra.mxu0 %v656
    %874 = vmatprep.subr.mxu0 %v659
    %875 = vmatpush1.msra.mxu0 %v658
    %876 = vmatprep.subr.mxu0 %v661
    %877 = vmatpush1.msra.mxu0 %v660
    %878 = vmatprep.subr.mxu0 %v663
    %879 = vmatpush1.msra.mxu0 %v662
    %880 = vmatprep.subr.mxu0 %v665
    %881 = vmatpush1.msra.mxu0 %v664
    %882 = vmatprep.subr.mxu0 %v667
    %883 = vmatpush1.msra.mxu0 %v666
    %884 = vmatprep.subr.mxu0 %v669
    %885 = vmatpush1.msra.mxu0 %v668
    %886 = vmatprep.subr.mxu0 %v671
    %887 = vmatpush1.msra.mxu0 %v670
    %888 = vmatprep.subr.mxu0 %v673
    %889 = vmatpush1.msra.mxu0 %v672
    %890 = vmatprep.subr.mxu0 %v675
    %891 = vmatpush1.msra.mxu0 %v674
    %892 = vmatprep.subr.mxu0 %v677
    %893 = vmatpush1.msra.mxu0 %v676
    %894 = vmatprep.subr.mxu0 %v679
    %895 = vmatpush1.msra.mxu0 %v678
    %896 = vmatprep.subr.mxu0 %v681
    %897 = vmatpush1.msra.mxu0 %v680
    %898 = vmatprep.subr.mxu0 %v683
    %899 = vmatpush1.msra.mxu0 %v682
    %900 = vmatprep.subr.mxu0 %v685
    %901 = vmatpush1.msra.mxu0 %v684
    %902 = vmatprep.mubr.f32.mxu0 %v57
    %903 = vmatmul.mubr.f32.gmra.mrb[0].mxu0 %v56
    %v904 = vpop.f32.mrb[0].mxu0
    %v905 = vadd.f32 %v834, %v904
    %v906 = vpop.f32.mrb[0].mxu0
    %v907 = vadd.f32 %v836, %v906
    %908 = vdwg.mxu0
    %909 = vmatprep.subr.mxu0 %v687
    %910 = vmatpush1.msra.mxu0 %v686
    %911 = vmatprep.subr.mxu0 %v689
    %912 = vmatpush1.msra.mxu0 %v688
    %913 = vmatprep.subr.mxu0 %v691
    %914 = vmatpush1.msra.mxu0 %v690
    %915 = vmatprep.subr.mxu0 %v693
    %916 = vmatpush1.msra.mxu0 %v692
    %917 = vmatprep.subr.mxu0 %v695
    %918 = vmatpush1.msra.mxu0 %v694
    %919 = vmatprep.subr.mxu0 %v697
    %920 = vmatpush1.msra.mxu0 %v696
    %921 = vmatprep.subr.mxu0 %v699
    %922 = vmatpush1.msra.mxu0 %v698
    %923 = vmatprep.subr.mxu0 %v701
    %924 = vmatpush1.msra.mxu0 %v700
    %925 = vmatprep.subr.mxu0 %v703
    %926 = vmatpush1.msra.mxu0 %v702
    %927 = vmatprep.subr.mxu0 %v705
    %928 = vmatpush1.msra.mxu0 %v704
    %929 = vmatprep.subr.mxu0 %v707
    %930 = vmatpush1.msra.mxu0 %v706
    %931 = vmatprep.subr.mxu0 %v709
    %932 = vmatpush1.msra.mxu0 %v708
    %933 = vmatprep.subr.mxu0 %v711
    %934 = vmatpush1.msra.mxu0 %v710
    %935 = vmatprep.subr.mxu0 %v713
    %936 = vmatpush1.msra.mxu0 %v712
    %937 = vmatprep.subr.mxu0 %v715
    %938 = vmatpush1.msra.mxu0 %v714
    %939 = vmatprep.subr.mxu0 %v717
    %940 = vmatpush1.msra.mxu0 %v716
    %941 = vmatprep.subr.mxu0 %v719
    %942 = vmatpush1.msra.mxu0 %v718
    %943 = vmatprep.subr.mxu0 %v721
    %944 = vmatpush1.msra.mxu0 %v720
    %945 = vmatprep.subr.mxu0 %v723
    %946 = vmatpush1.msra.mxu0 %v722
    %947 = vmatprep.subr.mxu0 %v725
    %948 = vmatpush1.msra.mxu0 %v724
    %949 = vmatprep.subr.mxu0 %v727
    %950 = vmatpush1.msra.mxu0 %v726
    %951 = vmatprep.subr.mxu0 %v729
    %952 = vmatpush1.msra.mxu0 %v728
    %953 = vmatprep.subr.mxu0 %v731
    %954 = vmatpush1.msra.mxu0 %v730
    %955 = vmatprep.subr.mxu0 %v733
    %956 = vmatpush1.msra.mxu0 %v732
    %957 = vmatprep.subr.mxu0 %v735
    %958 = vmatpush1.msra.mxu0 %v734
    %959 = vmatprep.subr.mxu0 %v737
    %960 = vmatpush1.msra.mxu0 %v736
    %961 = vmatprep.subr.mxu0 %v739
    %962 = vmatpush1.msra.mxu0 %v738
    %963 = vmatprep.subr.mxu0 %v741
    %964 = vmatpush1.msra.mxu0 %v740
    %965 = vmatprep.subr.mxu0 %v743
    %966 = vmatpush1.msra.mxu0 %v742
    %967 = vmatprep.subr.mxu0 %v745
    %968 = vmatpush1.msra.mxu0 %v744
    %969 = vmatprep.subr.mxu0 %v747
    %970 = vmatpush1.msra.mxu0 %v746
    %971 = vmatprep.subr.mxu0 %v749
    %972 = vmatpush1.msra.mxu0 %v748
    %973 = vmatprep.mubr.f32.mxu0 %v59
    %974 = vmatmul.mubr.f32.gmra.mrb[0].mxu0 %v58
    %v975 = vpop.f32.mrb[0].mxu0
    %v976 = vadd.f32 %v905, %v975
    %v977 = vpop.f32.mrb[0].mxu0
    %v978 = vadd.f32 %v907, %v977
    %979 = vdwg.mxu0
    %980 = vmatprep.subr.mxu0 %v751
    %981 = vmatpush1.msra.mxu0 %v750
    %982 = vmatprep.subr.mxu0 %v753
    %983 = vmatpush1.msra.mxu0 %v752
    %984 = vmatprep.subr.mxu0 0.0
    %985 = vmatpush1.msra.mxu0 0.0
    %986 = vmatprep.subr.mxu0 0.0
    %987 = vmatpush1.msra.mxu0 0.0
    %988 = vmatprep.subr.mxu0 0.0
    %989 = vmatpush1.msra.mxu0 0.0
    %990 = vmatprep.subr.mxu0 0.0
    %991 = vmatpush1.msra.mxu0 0.0
    %992 = vmatprep.subr.mxu0 0.0
    %993 = vmatpush1.msra.mxu0 0.0
    %994 = vmatprep.subr.mxu0 0.0
    %995 = vmatpush1.msra.mxu0 0.0
    %996 = vmatprep.subr.mxu0 0.0
    %997 = vmatpush1.msra.mxu0 0.0
    %998 = vmatprep.subr.mxu0 0.0
    %999 = vmatpush1.msra.mxu0 0.0
    %1000 = vmatprep.subr.mxu0 0.0
    %1001 = vmatpush1.msra.mxu0 0.0
    %1002 = vmatprep.subr.mxu0 0.0
    %1003 = vmatpush1.msra.mxu0 0.0
    %1004 = vmatprep.subr.mxu0 0.0
    %1005 = vmatpush1.msra.mxu0 0.0
    %1006 = vmatprep.subr.mxu0 0.0
    %1007 = vmatpush1.msra.mxu0 0.0
    %1008 = vmatprep.subr.mxu0 0.0
    %1009 = vmatpush1.msra.mxu0 0.0
    %1010 = vmatprep.subr.mxu0 0.0
    %1011 = vmatpush1.msra.mxu0 0.0
    %1012 = vmatprep.subr.mxu0 0.0
    %1013 = vmatpush1.msra.mxu0 0.0
    %1014 = vmatprep.subr.mxu0 0.0
    %1015 = vmatpush1.msra.mxu0 0.0
    %1016 = vmatprep.subr.mxu0 0.0
    %1017 = vmatpush1.msra.mxu0 0.0
    %1018 = vmatprep.subr.mxu0 0.0
    %1019 = vmatpush1.msra.mxu0 0.0
    %1020 = vmatprep.subr.mxu0 0.0
    %1021 = vmatpush1.msra.mxu0 0.0
    %1022 = vmatprep.subr.mxu0 0.0
    %1023 = vmatpush1.msra.mxu0 0.0
    %1024 = vmatprep.subr.mxu0 0.0
    %1025 = vmatpush1.msra.mxu0 0.0
    %1026 = vmatprep.subr.mxu0 0.0
    %1027 = vmatpush1.msra.mxu0 0.0
    %1028 = vmatprep.subr.mxu0 0.0
    %1029 = vmatpush1.msra.mxu0 0.0
    %1030 = vmatprep.subr.mxu0 0.0
    %1031 = vmatpush1.msra.mxu0 0.0
    %1032 = vmatprep.subr.mxu0 0.0
    %1033 = vmatpush1.msra.mxu0 0.0
    %1034 = vmatprep.subr.mxu0 0.0
    %1035 = vmatpush1.msra.mxu0 0.0
    %1036 = vmatprep.subr.mxu0 0.0
    %1037 = vmatpush1.msra.mxu0 0.0
    %1038 = vmatprep.subr.mxu0 0.0
    %1039 = vmatpush1.msra.mxu0 0.0
    %1040 = vmatprep.subr.mxu0 0.0
    %1041 = vmatpush1.msra.mxu0 0.0
    %1042 = vmatprep.subr.mxu0 0.0
    %1043 = vmatpush1.msra.mxu0 0.0
    %1044 = vmatprep.mubr.f32.mxu0 0.0
    %1045 = vmatmul.mubr.f32.gmra.mrb[0].mxu0 %v271
    %v1046 = vpop.f32.mrb[0].mxu0
    %v1047 = vadd.f32 %v976, %v1046
    %v1048 = vpop.f32.mrb[0].mxu0
    %v1049 = vadd.f32 %v978, %v1048
    %1050 = vdwg.mxu0
    %v1051 = vmax.f32 %v553, %v1047
    %v1052 = vmax.f32 %v555, %v1049
    %s1053 = scalar_lea.vmem [#allocation5], 3136
    %v1054 = vld [vmem:[%s1053] sm:$0xff]
    %v1055 = vld [vmem:[%s1053 + $0x8] sm:$0xff]
    %v1056 = vld [vmem:[%s1053 + $0x10] sm:$0xff]
    %v1057 = vld [vmem:[%s1053 + $0x18] sm:$0xff]
    %v1058 = vld [vmem:[%s1053 + $0x20] sm:$0xff]
    %v1059 = vld [vmem:[%s1053 + $0x28] sm:$0xff]
    %v1060 = vld [vmem:[%s1053 + $0x30] sm:$0xff]
    %v1061 = vld [vmem:[%s1053 + $0x38] sm:$0xff]
    %v1062 = vld [vmem:[%s1053 + $0x40] sm:$0xff]
    %v1063 = vld [vmem:[%s1053 + $0x48] sm:$0xff]
    %v1064 = vld [vmem:[%s1053 + $0x50] sm:$0xff]
    %v1065 = vld [vmem:[%s1053 + $0x58] sm:$0xff]
    %v1066 = vld [vmem:[%s1053 + $0x60] sm:$0xff]
    %v1067 = vld [vmem:[%s1053 + $0x68] sm:$0xff]
    %v1068 = vld [vmem:[%s1053 + $0x70] sm:$0xff]
    %v1069 = vld [vmem:[%s1053 + $0x78] sm:$0xff]
    %v1070 = vld [vmem:[%s1053 + $0x80] sm:$0xff]
    %v1071 = vld [vmem:[%s1053 + $0x88] sm:$0xff]
    %v1072 = vld [vmem:[%s1053 + $0x90] sm:$0xff]
    %v1073 = vld [vmem:[%s1053 + $0x98] sm:$0xff]
    %v1074 = vld [vmem:[%s1053 + $0xa0] sm:$0xff]
    %v1075 = vld [vmem:[%s1053 + $0xa8] sm:$0xff]
    %v1076 = vld [vmem:[%s1053 + $0xb0] sm:$0xff]
    %v1077 = vld [vmem:[%s1053 + $0xb8] sm:$0xff]
    %v1078 = vld [vmem:[%s1053 + $0xc0] sm:$0xff]
    %v1079 = vld [vmem:[%s1053 + $0xc8] sm:$0xff]
    %v1080 = vld [vmem:[%s1053 + $0xd0] sm:$0xff]
    %v1081 = vld [vmem:[%s1053 + $0xd8] sm:$0xff]
    %v1082 = vld [vmem:[%s1053 + $0xe0] sm:$0xff]
    %v1083 = vld [vmem:[%s1053 + $0xe8] sm:$0xff]
    %v1084 = vld [vmem:[%s1053 + $0xf0] sm:$0xff]
    %v1085 = vld [vmem:[%s1053 + $0xf8] sm:$0xff]
    %v1086 = vld [vmem:[%s1053 + $0x100] sm:$0xff]
    %v1087 = vld [vmem:[%s1053 + $0x108] sm:$0xff]
    %v1088 = vld [vmem:[%s1053 + $0x110] sm:$0xff]
    %v1089 = vld [vmem:[%s1053 + $0x118] sm:$0xff]
    %v1090 = vld [vmem:[%s1053 + $0x120] sm:$0xff]
    %v1091 = vld [vmem:[%s1053 + $0x128] sm:$0xff]
    %v1092 = vld [vmem:[%s1053 + $0x130] sm:$0xff]
    %v1093 = vld [vmem:[%s1053 + $0x138] sm:$0xff]
    %v1094 = vld [vmem:[%s1053 + $0x140] sm:$0xff]
    %v1095 = vld [vmem:[%s1053 + $0x148] sm:$0xff]
    %v1096 = vld [vmem:[%s1053 + $0x150] sm:$0xff]
    %v1097 = vld [vmem:[%s1053 + $0x158] sm:$0xff]
    %v1098 = vld [vmem:[%s1053 + $0x160] sm:$0xff]
    %v1099 = vld [vmem:[%s1053 + $0x168] sm:$0xff]
    %v1100 = vld [vmem:[%s1053 + $0x170] sm:$0xff]
    %v1101 = vld [vmem:[%s1053 + $0x178] sm:$0xff]
    %v1102 = vld [vmem:[%s1053 + $0x180] sm:$0xff]
    %v1103 = vld [vmem:[%s1053 + $0x188] sm:$0xff]
    %v1104 = vld [vmem:[%s1053 + $0x190] sm:$0xff]
    %v1105 = vld [vmem:[%s1053 + $0x198] sm:$0xff]
    %v1106 = vld [vmem:[%s1053 + $0x1a0] sm:$0xff]
    %v1107 = vld [vmem:[%s1053 + $0x1a8] sm:$0xff]
    %v1108 = vld [vmem:[%s1053 + $0x1b0] sm:$0xff]
    %v1109 = vld [vmem:[%s1053 + $0x1b8] sm:$0xff]
    %v1110 = vld [vmem:[%s1053 + $0x1c0] sm:$0xff]
    %v1111 = vld [vmem:[%s1053 + $0x1c8] sm:$0xff]
    %v1112 = vld [vmem:[%s1053 + $0x1d0] sm:$0xff]
    %v1113 = vld [vmem:[%s1053 + $0x1d8] sm:$0xff]
    %v1114 = vld [vmem:[%s1053 + $0x1e0] sm:$0xff]
    %v1115 = vld [vmem:[%s1053 + $0x1e8] sm:$0xff]
    %v1116 = vld [vmem:[%s1053 + $0x1f0] sm:$0xff]
    %v1117 = vld [vmem:[%s1053 + $0x1f8] sm:$0xff]
    %v1118 = vld [vmem:[%s1053 + $0x200] sm:$0xff]
    %v1119 = vld [vmem:[%s1053 + $0x208] sm:$0xff]
    %v1120 = vld [vmem:[%s1053 + $0x210] sm:$0xff]
    %v1121 = vld [vmem:[%s1053 + $0x218] sm:$0xff]
    %v1122 = vld [vmem:[%s1053 + $0x220] sm:$0xff]
    %v1123 = vld [vmem:[%s1053 + $0x228] sm:$0xff]
    %v1124 = vld [vmem:[%s1053 + $0x230] sm:$0xff]
    %v1125 = vld [vmem:[%s1053 + $0x238] sm:$0xff]
    %v1126 = vld [vmem:[%s1053 + $0x240] sm:$0xff]
    %v1127 = vld [vmem:[%s1053 + $0x248] sm:$0xff]
    %v1128 = vld [vmem:[%s1053 + $0x250] sm:$0xff]
    %v1129 = vld [vmem:[%s1053 + $0x258] sm:$0xff]
    %v1130 = vld [vmem:[%s1053 + $0x260] sm:$0xff]
    %v1131 = vld [vmem:[%s1053 + $0x268] sm:$0xff]
    %v1132 = vld [vmem:[%s1053 + $0x270] sm:$0xff]
    %v1133 = vld [vmem:[%s1053 + $0x278] sm:$0xff]
    %v1134 = vld [vmem:[%s1053 + $0x280] sm:$0xff]
    %v1135 = vld [vmem:[%s1053 + $0x288] sm:$0xff]
    %v1136 = vld [vmem:[%s1053 + $0x290] sm:$0xff]
    %v1137 = vld [vmem:[%s1053 + $0x298] sm:$0xff]
    %v1138 = vld [vmem:[%s1053 + $0x2a0] sm:$0xff]
    %v1139 = vld [vmem:[%s1053 + $0x2a8] sm:$0xff]
    %v1140 = vld [vmem:[%s1053 + $0x2b0] sm:$0xff]
    %v1141 = vld [vmem:[%s1053 + $0x2b8] sm:$0xff]
    %v1142 = vld [vmem:[%s1053 + $0x2c0] sm:$0xff]
    %v1143 = vld [vmem:[%s1053 + $0x2c8] sm:$0xff]
    %v1144 = vld [vmem:[%s1053 + $0x2d0] sm:$0xff]
    %v1145 = vld [vmem:[%s1053 + $0x2d8] sm:$0xff]
    %v1146 = vld [vmem:[%s1053 + $0x2e0] sm:$0xff]
    %v1147 = vld [vmem:[%s1053 + $0x2e8] sm:$0xff]
    %v1148 = vld [vmem:[%s1053 + $0x2f0] sm:$0xff]
    %v1149 = vld [vmem:[%s1053 + $0x2f8] sm:$0xff]
    %v1150 = vld [vmem:[%s1053 + $0x300] sm:$0xff]
    %v1151 = vld [vmem:[%s1053 + $0x308] sm:$0xff]
    %v1152 = vld [vmem:[%s1053 + $0x310] sm:$0xff]
    %v1153 = vld [vmem:[%s1053 + $0x318] sm:$0xff]
    %v1154 = vld [vmem:[%s1053 + $0x320] sm:$0xff]
    %v1155 = vld [vmem:[%s1053 + $0x328] sm:$0xff]
    %v1156 = vld [vmem:[%s1053 + $0x330] sm:$0xff]
    %v1157 = vld [vmem:[%s1053 + $0x338] sm:$0xff]
    %v1158 = vld [vmem:[%s1053 + $0x340] sm:$0xff]
    %v1159 = vld [vmem:[%s1053 + $0x348] sm:$0xff]
    %v1160 = vld [vmem:[%s1053 + $0x350] sm:$0xff]
    %v1161 = vld [vmem:[%s1053 + $0x358] sm:$0xff]
    %v1162 = vld [vmem:[%s1053 + $0x360] sm:$0xff]
    %v1163 = vld [vmem:[%s1053 + $0x368] sm:$0xff]
    %v1164 = vld [vmem:[%s1053 + $0x370] sm:$0xff]
    %v1165 = vld [vmem:[%s1053 + $0x378] sm:$0xff]
    %v1166 = vld [vmem:[%s1053 + $0x380] sm:$0xff]
    %v1167 = vld [vmem:[%s1053 + $0x388] sm:$0xff]
    %v1168 = vld [vmem:[%s1053 + $0x390] sm:$0xff]
    %v1169 = vld [vmem:[%s1053 + $0x398] sm:$0xff]
    %v1170 = vld [vmem:[%s1053 + $0x3a0] sm:$0xff]
    %v1171 = vld [vmem:[%s1053 + $0x3a8] sm:$0xff]
    %v1172 = vld [vmem:[%s1053 + $0x3b0] sm:$0xff]
    %v1173 = vld [vmem:[%s1053 + $0x3b8] sm:$0xff]
    %v1174 = vld [vmem:[%s1053 + $0x3c0] sm:$0xff]
    %v1175 = vld [vmem:[%s1053 + $0x3c8] sm:$0xff]
    %v1176 = vld [vmem:[%s1053 + $0x3d0] sm:$0xff]
    %v1177 = vld [vmem:[%s1053 + $0x3d8] sm:$0xff]
    %v1178 = vld [vmem:[%s1053 + $0x3e0] sm:$0xff]
    %v1179 = vld [vmem:[%s1053 + $0x3e8] sm:$0xff]
    %v1180 = vld [vmem:[%s1053 + $0x3f0] sm:$0xff]
    %v1181 = vld [vmem:[%s1053 + $0x3f8] sm:$0xff]
    %v1182 = vld [vmem:[%s1053 + $0x400] sm:$0xff]
    %v1183 = vld [vmem:[%s1053 + $0x408] sm:$0xff]
    %v1184 = vld [vmem:[%s1053 + $0x410] sm:$0xff]
    %v1185 = vld [vmem:[%s1053 + $0x418] sm:$0xff]
    %v1186 = vld [vmem:[%s1053 + $0x420] sm:$0xff]
    %v1187 = vld [vmem:[%s1053 + $0x428] sm:$0xff]
    %v1188 = vld [vmem:[%s1053 + $0x430] sm:$0xff]
    %v1189 = vld [vmem:[%s1053 + $0x438] sm:$0xff]
    %v1190 = vld [vmem:[%s1053 + $0x440] sm:$0xff]
    %v1191 = vld [vmem:[%s1053 + $0x448] sm:$0xff]
    %v1192 = vld [vmem:[%s1053 + $0x450] sm:$0xff]
    %v1193 = vld [vmem:[%s1053 + $0x458] sm:$0xff]
    %v1194 = vld [vmem:[%s1053 + $0x460] sm:$0xff]
    %v1195 = vld [vmem:[%s1053 + $0x468] sm:$0xff]
    %v1196 = vld [vmem:[%s1053 + $0x470] sm:$0xff]
    %v1197 = vld [vmem:[%s1053 + $0x478] sm:$0xff]
    %v1198 = vld [vmem:[%s1053 + $0x480] sm:$0xff]
    %v1199 = vld [vmem:[%s1053 + $0x488] sm:$0xff]
    %v1200 = vld [vmem:[%s1053 + $0x490] sm:$0xff]
    %v1201 = vld [vmem:[%s1053 + $0x498] sm:$0xff]
    %v1202 = vld [vmem:[%s1053 + $0x4a0] sm:$0xff]
    %v1203 = vld [vmem:[%s1053 + $0x4a8] sm:$0xff]
    %v1204 = vld [vmem:[%s1053 + $0x4b0] sm:$0xff]
    %v1205 = vld [vmem:[%s1053 + $0x4b8] sm:$0xff]
    %v1206 = vld [vmem:[%s1053 + $0x4c0] sm:$0xff]
    %v1207 = vld [vmem:[%s1053 + $0x4c8] sm:$0xff]
    %v1208 = vld [vmem:[%s1053 + $0x4d0] sm:$0xff]
    %v1209 = vld [vmem:[%s1053 + $0x4d8] sm:$0xff]
    %v1210 = vld [vmem:[%s1053 + $0x4e0] sm:$0xff]
    %v1211 = vld [vmem:[%s1053 + $0x4e8] sm:$0xff]
    %v1212 = vld [vmem:[%s1053 + $0x4f0] sm:$0xff]
    %v1213 = vld [vmem:[%s1053 + $0x4f8] sm:$0xff]
    %v1214 = vld [vmem:[%s1053 + $0x500] sm:$0xff]
    %v1215 = vld [vmem:[%s1053 + $0x508] sm:$0xff]
    %v1216 = vld [vmem:[%s1053 + $0x510] sm:$0xff]
    %v1217 = vld [vmem:[%s1053 + $0x518] sm:$0xff]
    %v1218 = vld [vmem:[%s1053 + $0x520] sm:$0xff]
    %v1219 = vld [vmem:[%s1053 + $0x528] sm:$0xff]
    %v1220 = vld [vmem:[%s1053 + $0x530] sm:$0xff]
    %v1221 = vld [vmem:[%s1053 + $0x538] sm:$0xff]
    %v1222 = vld [vmem:[%s1053 + $0x540] sm:$0xff]
    %v1223 = vld [vmem:[%s1053 + $0x548] sm:$0xff]
    %v1224 = vld [vmem:[%s1053 + $0x550] sm:$0xff]
    %v1225 = vld [vmem:[%s1053 + $0x558] sm:$0xff]
    %v1226 = vld [vmem:[%s1053 + $0x560] sm:$0xff]
    %v1227 = vld [vmem:[%s1053 + $0x568] sm:$0xff]
    %v1228 = vld [vmem:[%s1053 + $0x570] sm:$0xff]
    %v1229 = vld [vmem:[%s1053 + $0x578] sm:$0xff]
    %v1230 = vld [vmem:[%s1053 + $0x580] sm:$0xff]
    %v1231 = vld [vmem:[%s1053 + $0x588] sm:$0xff]
    %v1232 = vld [vmem:[%s1053 + $0x590] sm:$0xff]
    %v1233 = vld [vmem:[%s1053 + $0x598] sm:$0xff]
    %v1234 = vld [vmem:[%s1053 + $0x5a0] sm:$0xff]
    %v1235 = vld [vmem:[%s1053 + $0x5a8] sm:$0xff]
    %v1236 = vld [vmem:[%s1053 + $0x5b0] sm:$0xff]
    %v1237 = vld [vmem:[%s1053 + $0x5b8] sm:$0xff]
    %v1238 = vld [vmem:[%s1053 + $0x5c0] sm:$0xff]
    %v1239 = vld [vmem:[%s1053 + $0x5c8] sm:$0xff]
    %v1240 = vld [vmem:[%s1053 + $0x5d0] sm:$0xff]
    %v1241 = vld [vmem:[%s1053 + $0x5d8] sm:$0xff]
    %v1242 = vld [vmem:[%s1053 + $0x5e0] sm:$0xff]
    %v1243 = vld [vmem:[%s1053 + $0x5e8] sm:$0xff]
    %v1244 = vld [vmem:[%s1053 + $0x5f0] sm:$0xff]
    %v1245 = vld [vmem:[%s1053 + $0x5f8] sm:$0xff]
    %v1246 = vld [vmem:[%s1053 + $0x600] sm:$0xff]
    %v1247 = vld [vmem:[%s1053 + $0x608] sm:$0xff]
    %v1248 = vld [vmem:[%s1053 + $0x610] sm:$0xff]
    %v1249 = vld [vmem:[%s1053 + $0x618] sm:$0xff]
    %s1250 = scalar_lea.vmem [#allocation7], 4
    %v1251 = vld [vmem:[%s1250] sm:$0x3]
    %v1253 = vlaneseq
    %v1254 = vshrl.u32 %v1253, 7
    %v1255 = vsub.s32 0, %v1254
    %v1256 = vrot.slane %v1251, %v1255
    %v1257 = vlaneseq
    %v1258 = vshrl.u32 %v1257, 7
    %v1259 = vsub.s32 1, %v1258
    %v1260 = vrot.slane %v1251, %v1259
    %1263 = vmatprep.subr.mxu0 %v1055
    %1264 = vmatpush1.msra.mxu0 %v1054
    %1265 = vmatprep.subr.mxu0 %v1057
    %1266 = vmatpush1.msra.mxu0 %v1056
    %1267 = vmatprep.subr.mxu0 %v1059
    %1268 = vmatpush1.msra.mxu0 %v1058
    %1269 = vmatprep.subr.mxu0 %v1061
    %1270 = vmatpush1.msra.mxu0 %v1060
    %1271 = vmatprep.subr.mxu0 %v1063
    %1272 = vmatpush1.msra.mxu0 %v1062
    %1273 = vmatprep.subr.mxu0 %v1065
    %1274 = vmatpush1.msra.mxu0 %v1064
    %1275 = vmatprep.subr.mxu0 %v1067
    %1276 = vmatpush1.msra.mxu0 %v1066
    %1277 = vmatprep.subr.mxu0 %v1069
    %1278 = vmatpush1.msra.mxu0 %v1068
    %1279 = vmatprep.subr.mxu0 %v1071
    %1280 = vmatpush1.msra.mxu0 %v1070
    %1281 = vmatprep.subr.mxu0 %v1073
    %1282 = vmatpush1.msra.mxu0 %v1072
    %1283 = vmatprep.subr.mxu0 %v1075
    %1284 = vmatpush1.msra.mxu0 %v1074
    %1285 = vmatprep.subr.mxu0 %v1077
    %1286 = vmatpush1.msra.mxu0 %v1076
    %1287 = vmatprep.subr.mxu0 %v1079
    %1288 = vmatpush1.msra.mxu0 %v1078
    %1289 = vmatprep.subr.mxu0 %v1081
    %1290 = vmatpush1.msra.mxu0 %v1080
    %1291 = vmatprep.subr.mxu0 %v1083
    %1292 = vmatpush1.msra.mxu0 %v1082
    %1293 = vmatprep.subr.mxu0 %v1085
    %1294 = vmatpush1.msra.mxu0 %v1084
    %1295 = vmatprep.subr.mxu0 %v1087
    %1296 = vmatpush1.msra.mxu0 %v1086
    %1297 = vmatprep.subr.mxu0 %v1089
    %1298 = vmatpush1.msra.mxu0 %v1088
    %1299 = vmatprep.subr.mxu0 %v1091
    %1300 = vmatpush1.msra.mxu0 %v1090
    %1301 = vmatprep.subr.mxu0 %v1093
    %1302 = vmatpush1.msra.mxu0 %v1092
    %1303 = vmatprep.subr.mxu0 %v1095
    %1304 = vmatpush1.msra.mxu0 %v1094
    %1305 = vmatprep.subr.mxu0 %v1097
    %1306 = vmatpush1.msra.mxu0 %v1096
    %1307 = vmatprep.subr.mxu0 %v1099
    %1308 = vmatpush1.msra.mxu0 %v1098
    %1309 = vmatprep.subr.mxu0 %v1101
    %1310 = vmatpush1.msra.mxu0 %v1100
    %1311 = vmatprep.subr.mxu0 %v1103
    %1312 = vmatpush1.msra.mxu0 %v1102
    %1313 = vmatprep.subr.mxu0 %v1105
    %1314 = vmatpush1.msra.mxu0 %v1104
    %1315 = vmatprep.subr.mxu0 %v1107
    %1316 = vmatpush1.msra.mxu0 %v1106
    %1317 = vmatprep.subr.mxu0 %v1109
    %1318 = vmatpush1.msra.mxu0 %v1108
    %1319 = vmatprep.subr.mxu0 %v1111
    %1320 = vmatpush1.msra.mxu0 %v1110
    %1321 = vmatprep.subr.mxu0 %v1113
    %1322 = vmatpush1.msra.mxu0 %v1112
    %1323 = vmatprep.subr.mxu0 %v1115
    %1324 = vmatpush1.msra.mxu0 %v1114
    %1325 = vmatprep.subr.mxu0 %v1117
    %1326 = vmatpush1.msra.mxu0 %v1116
    %1327 = vmatprep.mubr.f32.mxu0 %v55
    %1328 = vmatmul.mubr.f32.gmra.mrb[0].mxu0 %v54
    %v1329 = vpop.f32.mrb[0].mxu0
    %v1330 = vadd.f32 %v1256, %v1329
    %v1331 = vpop.f32.mrb[0].mxu0
    %v1332 = vadd.f32 %v1260, %v1331
    %1333 = vdwg.mxu0
    %1334 = vmatprep.subr.mxu0 %v1119
    %1335 = vmatpush1.msra.mxu0 %v1118
    %1336 = vmatprep.subr.mxu0 %v1121
    %1337 = vmatpush1.msra.mxu0 %v1120
    %1338 = vmatprep.subr.mxu0 %v1123
    %1339 = vmatpush1.msra.mxu0 %v1122
    %1340 = vmatprep.subr.mxu0 %v1125
    %1341 = vmatpush1.msra.mxu0 %v1124
    %1342 = vmatprep.subr.mxu0 %v1127
    %1343 = vmatpush1.msra.mxu0 %v1126
    %1344 = vmatprep.subr.mxu0 %v1129
    %1345 = vmatpush1.msra.mxu0 %v1128
    %1346 = vmatprep.subr.mxu0 %v1131
    %1347 = vmatpush1.msra.mxu0 %v1130
    %1348 = vmatprep.subr.mxu0 %v1133
    %1349 = vmatpush1.msra.mxu0 %v1132
    %1350 = vmatprep.subr.mxu0 %v1135
    %1351 = vmatpush1.msra.mxu0 %v1134
    %1352 = vmatprep.subr.mxu0 %v1137
    %1353 = vmatpush1.msra.mxu0 %v1136
    %1354 = vmatprep.subr.mxu0 %v1139
    %1355 = vmatpush1.msra.mxu0 %v1138
    %1356 = vmatprep.subr.mxu0 %v1141
    %1357 = vmatpush1.msra.mxu0 %v1140
    %1358 = vmatprep.subr.mxu0 %v1143
    %1359 = vmatpush1.msra.mxu0 %v1142
    %1360 = vmatprep.subr.mxu0 %v1145
    %1361 = vmatpush1.msra.mxu0 %v1144
    %1362 = vmatprep.subr.mxu0 %v1147
    %1363 = vmatpush1.msra.mxu0 %v1146
    %1364 = vmatprep.subr.mxu0 %v1149
    %1365 = vmatpush1.msra.mxu0 %v1148
    %1366 = vmatprep.subr.mxu0 %v1151
    %1367 = vmatpush1.msra.mxu0 %v1150
    %1368 = vmatprep.subr.mxu0 %v1153
    %1369 = vmatpush1.msra.mxu0 %v1152
    %1370 = vmatprep.subr.mxu0 %v1155
    %1371 = vmatpush1.msra.mxu0 %v1154
    %1372 = vmatprep.subr.mxu0 %v1157
    %1373 = vmatpush1.msra.mxu0 %v1156
    %1374 = vmatprep.subr.mxu0 %v1159
    %1375 = vmatpush1.msra.mxu0 %v1158
    %1376 = vmatprep.subr.mxu0 %v1161
    %1377 = vmatpush1.msra.mxu0 %v1160
    %1378 = vmatprep.subr.mxu0 %v1163
    %1379 = vmatpush1.msra.mxu0 %v1162
    %1380 = vmatprep.subr.mxu0 %v1165
    %1381 = vmatpush1.msra.mxu0 %v1164
    %1382 = vmatprep.subr.mxu0 %v1167
    %1383 = vmatpush1.msra.mxu0 %v1166
    %1384 = vmatprep.subr.mxu0 %v1169
    %1385 = vmatpush1.msra.mxu0 %v1168
    %1386 = vmatprep.subr.mxu0 %v1171
    %1387 = vmatpush1.msra.mxu0 %v1170
    %1388 = vmatprep.subr.mxu0 %v1173
    %1389 = vmatpush1.msra.mxu0 %v1172
    %1390 = vmatprep.subr.mxu0 %v1175
    %1391 = vmatpush1.msra.mxu0 %v1174
    %1392 = vmatprep.subr.mxu0 %v1177
    %1393 = vmatpush1.msra.mxu0 %v1176
    %1394 = vmatprep.subr.mxu0 %v1179
    %1395 = vmatpush1.msra.mxu0 %v1178
    %1396 = vmatprep.subr.mxu0 %v1181
    %1397 = vmatpush1.msra.mxu0 %v1180
    %1398 = vmatprep.mubr.f32.mxu0 %v57
    %1399 = vmatmul.mubr.f32.gmra.mrb[0].mxu0 %v56
    %v1400 = vpop.f32.mrb[0].mxu0
    %v1401 = vadd.f32 %v1330, %v1400
    %v1402 = vpop.f32.mrb[0].mxu0
    %v1403 = vadd.f32 %v1332, %v1402
    %1404 = vdwg.mxu0
    %1405 = vmatprep.subr.mxu0 %v1183
    %1406 = vmatpush1.msra.mxu0 %v1182
    %1407 = vmatprep.subr.mxu0 %v1185
    %1408 = vmatpush1.msra.mxu0 %v1184
    %1409 = vmatprep.subr.mxu0 %v1187
    %1410 = vmatpush1.msra.mxu0 %v1186
    %1411 = vmatprep.subr.mxu0 %v1189
    %1412 = vmatpush1.msra.mxu0 %v1188
    %1413 = vmatprep.subr.mxu0 %v1191
    %1414 = vmatpush1.msra.mxu0 %v1190
    %1415 = vmatprep.subr.mxu0 %v1193
    %1416 = vmatpush1.msra.mxu0 %v1192
    %1417 = vmatprep.subr.mxu0 %v1195
    %1418 = vmatpush1.msra.mxu0 %v1194
    %1419 = vmatprep.subr.mxu0 %v1197
    %1420 = vmatpush1.msra.mxu0 %v1196
    %1421 = vmatprep.subr.mxu0 %v1199
    %1422 = vmatpush1.msra.mxu0 %v1198
    %1423 = vmatprep.subr.mxu0 %v1201
    %1424 = vmatpush1.msra.mxu0 %v1200
    %1425 = vmatprep.subr.mxu0 %v1203
    %1426 = vmatpush1.msra.mxu0 %v1202
    %1427 = vmatprep.subr.mxu0 %v1205
    %1428 = vmatpush1.msra.mxu0 %v1204
    %1429 = vmatprep.subr.mxu0 %v1207
    %1430 = vmatpush1.msra.mxu0 %v1206
    %1431 = vmatprep.subr.mxu0 %v1209
    %1432 = vmatpush1.msra.mxu0 %v1208
    %1433 = vmatprep.subr.mxu0 %v1211
    %1434 = vmatpush1.msra.mxu0 %v1210
    %1435 = vmatprep.subr.mxu0 %v1213
    %1436 = vmatpush1.msra.mxu0 %v1212
    %1437 = vmatprep.subr.mxu0 %v1215
    %1438 = vmatpush1.msra.mxu0 %v1214
    %1439 = vmatprep.subr.mxu0 %v1217
    %1440 = vmatpush1.msra.mxu0 %v1216
    %1441 = vmatprep.subr.mxu0 %v1219
    %1442 = vmatpush1.msra.mxu0 %v1218
    %1443 = vmatprep.subr.mxu0 %v1221
    %1444 = vmatpush1.msra.mxu0 %v1220
    %1445 = vmatprep.subr.mxu0 %v1223
    %1446 = vmatpush1.msra.mxu0 %v1222
    %1447 = vmatprep.subr.mxu0 %v1225
    %1448 = vmatpush1.msra.mxu0 %v1224
    %1449 = vmatprep.subr.mxu0 %v1227
    %1450 = vmatpush1.msra.mxu0 %v1226
    %1451 = vmatprep.subr.mxu0 %v1229
    %1452 = vmatpush1.msra.mxu0 %v1228
    %1453 = vmatprep.subr.mxu0 %v1231
    %1454 = vmatpush1.msra.mxu0 %v1230
    %1455 = vmatprep.subr.mxu0 %v1233
    %1456 = vmatpush1.msra.mxu0 %v1232
    %1457 = vmatprep.subr.mxu0 %v1235
    %1458 = vmatpush1.msra.mxu0 %v1234
    %1459 = vmatprep.subr.mxu0 %v1237
    %1460 = vmatpush1.msra.mxu0 %v1236
    %1461 = vmatprep.subr.mxu0 %v1239
    %1462 = vmatpush1.msra.mxu0 %v1238
    %1463 = vmatprep.subr.mxu0 %v1241
    %1464 = vmatpush1.msra.mxu0 %v1240
    %1465 = vmatprep.subr.mxu0 %v1243
    %1466 = vmatpush1.msra.mxu0 %v1242
    %1467 = vmatprep.subr.mxu0 %v1245
    %1468 = vmatpush1.msra.mxu0 %v1244
    %1469 = vmatprep.mubr.f32.mxu0 %v59
    %1470 = vmatmul.mubr.f32.gmra.mrb[0].mxu0 %v58
    %v1471 = vpop.f32.mrb[0].mxu0
    %v1472 = vadd.f32 %v1401, %v1471
    %v1473 = vpop.f32.mrb[0].mxu0
    %v1474 = vadd.f32 %v1403, %v1473
    %1475 = vdwg.mxu0
    %1476 = vmatprep.subr.mxu0 %v1247
    %1477 = vmatpush1.msra.mxu0 %v1246
    %1478 = vmatprep.subr.mxu0 %v1249
    %1479 = vmatpush1.msra.mxu0 %v1248
    %1480 = vmatprep.subr.mxu0 0.0
    %1481 = vmatpush1.msra.mxu0 0.0
    %1482 = vmatprep.subr.mxu0 0.0
    %1483 = vmatpush1.msra.mxu0 0.0
    %1484 = vmatprep.subr.mxu0 0.0
    %1485 = vmatpush1.msra.mxu0 0.0
    %1486 = vmatprep.subr.mxu0 0.0
    %1487 = vmatpush1.msra.mxu0 0.0
    %1488 = vmatprep.subr.mxu0 0.0
    %1489 = vmatpush1.msra.mxu0 0.0
    %1490 = vmatprep.subr.mxu0 0.0
    %1491 = vmatpush1.msra.mxu0 0.0
    %1492 = vmatprep.subr.mxu0 0.0
    %1493 = vmatpush1.msra.mxu0 0.0
    %1494 = vmatprep.subr.mxu0 0.0
    %1495 = vmatpush1.msra.mxu0 0.0
    %1496 = vmatprep.subr.mxu0 0.0
    %1497 = vmatpush1.msra.mxu0 0.0
    %1498 = vmatprep.subr.mxu0 0.0
    %1499 = vmatpush1.msra.mxu0 0.0
    %1500 = vmatprep.subr.mxu0 0.0
    %1501 = vmatpush1.msra.mxu0 0.0
    %1502 = vmatprep.subr.mxu0 0.0
    %1503 = vmatpush1.msra.mxu0 0.0
    %1504 = vmatprep.subr.mxu0 0.0
    %1505 = vmatpush1.msra.mxu0 0.0
    %1506 = vmatprep.subr.mxu0 0.0
    %1507 = vmatpush1.msra.mxu0 0.0
    %1508 = vmatprep.subr.mxu0 0.0
    %1509 = vmatpush1.msra.mxu0 0.0
    %1510 = vmatprep.subr.mxu0 0.0
    %1511 = vmatpush1.msra.mxu0 0.0
    %1512 = vmatprep.subr.mxu0 0.0
    %1513 = vmatpush1.msra.mxu0 0.0
    %1514 = vmatprep.subr.mxu0 0.0
    %1515 = vmatpush1.msra.mxu0 0.0
    %1516 = vmatprep.subr.mxu0 0.0
    %1517 = vmatpush1.msra.mxu0 0.0
    %1518 = vmatprep.subr.mxu0 0.0
    %1519 = vmatpush1.msra.mxu0 0.0
    %1520 = vmatprep.subr.mxu0 0.0
    %1521 = vmatpush1.msra.mxu0 0.0
    %1522 = vmatprep.subr.mxu0 0.0
    %1523 = vmatpush1.msra.mxu0 0.0
    %1524 = vmatprep.subr.mxu0 0.0
    %1525 = vmatpush1.msra.mxu0 0.0
    %1526 = vmatprep.subr.mxu0 0.0
    %1527 = vmatpush1.msra.mxu0 0.0
    %1528 = vmatprep.subr.mxu0 0.0
    %1529 = vmatpush1.msra.mxu0 0.0
    %1530 = vmatprep.subr.mxu0 0.0
    %1531 = vmatpush1.msra.mxu0 0.0
    %1532 = vmatprep.subr.mxu0 0.0
    %1533 = vmatpush1.msra.mxu0 0.0
    %1534 = vmatprep.subr.mxu0 0.0
    %1535 = vmatpush1.msra.mxu0 0.0
    %1536 = vmatprep.subr.mxu0 0.0
    %1537 = vmatpush1.msra.mxu0 0.0
    %1538 = vmatprep.subr.mxu0 0.0
    %1539 = vmatpush1.msra.mxu0 0.0
    %1540 = vmatprep.mubr.f32.mxu0 0.0
    %1541 = vmatmul.mubr.f32.gmra.mrb[0].mxu0 %v271
    %v1542 = vpop.f32.mrb[0].mxu0
    %v1543 = vadd.f32 %v1472, %v1542
    %v1544 = vpop.f32.mrb[0].mxu0
    %v1545 = vadd.f32 %v1474, %v1544
    %1546 = vdwg.mxu0
    %v1547 = vmax.f32 %v1051, %v1543
    %v1548 = vmax.f32 %v1052, %v1545
    %s1549 = scalar_lea.vmem [#allocation5], 4704
    %v1550 = vld [vmem:[%s1549] sm:$0xff]
    %v1551 = vld [vmem:[%s1549 + $0x8] sm:$0xff]
    %v1552 = vld [vmem:[%s1549 + $0x10] sm:$0xff]
    %v1553 = vld [vmem:[%s1549 + $0x18] sm:$0xff]
    %v1554 = vld [vmem:[%s1549 + $0x20] sm:$0xff]
    %v1555 = vld [vmem:[%s1549 + $0x28] sm:$0xff]
    %v1556 = vld [vmem:[%s1549 + $0x30] sm:$0xff]
    %v1557 = vld [vmem:[%s1549 + $0x38] sm:$0xff]
    %v1558 = vld [vmem:[%s1549 + $0x40] sm:$0xff]
    %v1559 = vld [vmem:[%s1549 + $0x48] sm:$0xff]
    %v1560 = vld [vmem:[%s1549 + $0x50] sm:$0xff]
    %v1561 = vld [vmem:[%s1549 + $0x58] sm:$0xff]
    %v1562 = vld [vmem:[%s1549 + $0x60] sm:$0xff]
    %v1563 = vld [vmem:[%s1549 + $0x68] sm:$0xff]
    %v1564 = vld [vmem:[%s1549 + $0x70] sm:$0xff]
    %v1565 = vld [vmem:[%s1549 + $0x78] sm:$0xff]
    %v1566 = vld [vmem:[%s1549 + $0x80] sm:$0xff]
    %v1567 = vld [vmem:[%s1549 + $0x88] sm:$0xff]
    %v1568 = vld [vmem:[%s1549 + $0x90] sm:$0xff]
    %v1569 = vld [vmem:[%s1549 + $0x98] sm:$0xff]
    %v1570 = vld [vmem:[%s1549 + $0xa0] sm:$0xff]
    %v1571 = vld [vmem:[%s1549 + $0xa8] sm:$0xff]
    %v1572 = vld [vmem:[%s1549 + $0xb0] sm:$0xff]
    %v1573 = vld [vmem:[%s1549 + $0xb8] sm:$0xff]
    %v1574 = vld [vmem:[%s1549 + $0xc0] sm:$0xff]
    %v1575 = vld [vmem:[%s1549 + $0xc8] sm:$0xff]
    %v1576 = vld [vmem:[%s1549 + $0xd0] sm:$0xff]
    %v1577 = vld [vmem:[%s1549 + $0xd8] sm:$0xff]
    %v1578 = vld [vmem:[%s1549 + $0xe0] sm:$0xff]
    %v1579 = vld [vmem:[%s1549 + $0xe8] sm:$0xff]
    %v1580 = vld [vmem:[%s1549 + $0xf0] sm:$0xff]
    %v1581 = vld [vmem:[%s1549 + $0xf8] sm:$0xff]
    %v1582 = vld [vmem:[%s1549 + $0x100] sm:$0xff]
    %v1583 = vld [vmem:[%s1549 + $0x108] sm:$0xff]
    %v1584 = vld [vmem:[%s1549 + $0x110] sm:$0xff]
    %v1585 = vld [vmem:[%s1549 + $0x118] sm:$0xff]
    %v1586 = vld [vmem:[%s1549 + $0x120] sm:$0xff]
    %v1587 = vld [vmem:[%s1549 + $0x128] sm:$0xff]
    %v1588 = vld [vmem:[%s1549 + $0x130] sm:$0xff]
    %v1589 = vld [vmem:[%s1549 + $0x138] sm:$0xff]
    %v1590 = vld [vmem:[%s1549 + $0x140] sm:$0xff]
    %v1591 = vld [vmem:[%s1549 + $0x148] sm:$0xff]
    %v1592 = vld [vmem:[%s1549 + $0x150] sm:$0xff]
    %v1593 = vld [vmem:[%s1549 + $0x158] sm:$0xff]
    %v1594 = vld [vmem:[%s1549 + $0x160] sm:$0xff]
    %v1595 = vld [vmem:[%s1549 + $0x168] sm:$0xff]
    %v1596 = vld [vmem:[%s1549 + $0x170] sm:$0xff]
    %v1597 = vld [vmem:[%s1549 + $0x178] sm:$0xff]
    %v1598 = vld [vmem:[%s1549 + $0x180] sm:$0xff]
    %v1599 = vld [vmem:[%s1549 + $0x188] sm:$0xff]
    %v1600 = vld [vmem:[%s1549 + $0x190] sm:$0xff]
    %v1601 = vld [vmem:[%s1549 + $0x198] sm:$0xff]
    %v1602 = vld [vmem:[%s1549 + $0x1a0] sm:$0xff]
    %v1603 = vld [vmem:[%s1549 + $0x1a8] sm:$0xff]
    %v1604 = vld [vmem:[%s1549 + $0x1b0] sm:$0xff]
    %v1605 = vld [vmem:[%s1549 + $0x1b8] sm:$0xff]
    %v1606 = vld [vmem:[%s1549 + $0x1c0] sm:$0xff]
    %v1607 = vld [vmem:[%s1549 + $0x1c8] sm:$0xff]
    %v1608 = vld [vmem:[%s1549 + $0x1d0] sm:$0xff]
    %v1609 = vld [vmem:[%s1549 + $0x1d8] sm:$0xff]
    %v1610 = vld [vmem:[%s1549 + $0x1e0] sm:$0xff]
    %v1611 = vld [vmem:[%s1549 + $0x1e8] sm:$0xff]
    %v1612 = vld [vmem:[%s1549 + $0x1f0] sm:$0xff]
    %v1613 = vld [vmem:[%s1549 + $0x1f8] sm:$0xff]
    %v1614 = vld [vmem:[%s1549 + $0x200] sm:$0xff]
    %v1615 = vld [vmem:[%s1549 + $0x208] sm:$0xff]
    %v1616 = vld [vmem:[%s1549 + $0x210] sm:$0xff]
    %v1617 = vld [vmem:[%s1549 + $0x218] sm:$0xff]
    %v1618 = vld [vmem:[%s1549 + $0x220] sm:$0xff]
    %v1619 = vld [vmem:[%s1549 + $0x228] sm:$0xff]
    %v1620 = vld [vmem:[%s1549 + $0x230] sm:$0xff]
    %v1621 = vld [vmem:[%s1549 + $0x238] sm:$0xff]
    %v1622 = vld [vmem:[%s1549 + $0x240] sm:$0xff]
    %v1623 = vld [vmem:[%s1549 + $0x248] sm:$0xff]
    %v1624 = vld [vmem:[%s1549 + $0x250] sm:$0xff]
    %v1625 = vld [vmem:[%s1549 + $0x258] sm:$0xff]
    %v1626 = vld [vmem:[%s1549 + $0x260] sm:$0xff]
    %v1627 = vld [vmem:[%s1549 + $0x268] sm:$0xff]
    %v1628 = vld [vmem:[%s1549 + $0x270] sm:$0xff]
    %v1629 = vld [vmem:[%s1549 + $0x278] sm:$0xff]
    %v1630 = vld [vmem:[%s1549 + $0x280] sm:$0xff]
    %v1631 = vld [vmem:[%s1549 + $0x288] sm:$0xff]
    %v1632 = vld [vmem:[%s1549 + $0x290] sm:$0xff]
    %v1633 = vld [vmem:[%s1549 + $0x298] sm:$0xff]
    %v1634 = vld [vmem:[%s1549 + $0x2a0] sm:$0xff]
    %v1635 = vld [vmem:[%s1549 + $0x2a8] sm:$0xff]
    %v1636 = vld [vmem:[%s1549 + $0x2b0] sm:$0xff]
    %v1637 = vld [vmem:[%s1549 + $0x2b8] sm:$0xff]
    %v1638 = vld [vmem:[%s1549 + $0x2c0] sm:$0xff]
    %v1639 = vld [vmem:[%s1549 + $0x2c8] sm:$0xff]
    %v1640 = vld [vmem:[%s1549 + $0x2d0] sm:$0xff]
    %v1641 = vld [vmem:[%s1549 + $0x2d8] sm:$0xff]
    %v1642 = vld [vmem:[%s1549 + $0x2e0] sm:$0xff]
    %v1643 = vld [vmem:[%s1549 + $0x2e8] sm:$0xff]
    %v1644 = vld [vmem:[%s1549 + $0x2f0] sm:$0xff]
    %v1645 = vld [vmem:[%s1549 + $0x2f8] sm:$0xff]
    %v1646 = vld [vmem:[%s1549 + $0x300] sm:$0xff]
    %v1647 = vld [vmem:[%s1549 + $0x308] sm:$0xff]
    %v1648 = vld [vmem:[%s1549 + $0x310] sm:$0xff]
    %v1649 = vld [vmem:[%s1549 + $0x318] sm:$0xff]
    %v1650 = vld [vmem:[%s1549 + $0x320] sm:$0xff]
    %v1651 = vld [vmem:[%s1549 + $0x328] sm:$0xff]
    %v1652 = vld [vmem:[%s1549 + $0x330] sm:$0xff]
    %v1653 = vld [vmem:[%s1549 + $0x338] sm:$0xff]
    %v1654 = vld [vmem:[%s1549 + $0x340] sm:$0xff]
    %v1655 = vld [vmem:[%s1549 + $0x348] sm:$0xff]
    %v1656 = vld [vmem:[%s1549 + $0x350] sm:$0xff]
    %v1657 = vld [vmem:[%s1549 + $0x358] sm:$0xff]
    %v1658 = vld [vmem:[%s1549 + $0x360] sm:$0xff]
    %v1659 = vld [vmem:[%s1549 + $0x368] sm:$0xff]
    %v1660 = vld [vmem:[%s1549 + $0x370] sm:$0xff]
    %v1661 = vld [vmem:[%s1549 + $0x378] sm:$0xff]
    %v1662 = vld [vmem:[%s1549 + $0x380] sm:$0xff]
    %v1663 = vld [vmem:[%s1549 + $0x388] sm:$0xff]
    %v1664 = vld [vmem:[%s1549 + $0x390] sm:$0xff]
    %v1665 = vld [vmem:[%s1549 + $0x398] sm:$0xff]
    %v1666 = vld [vmem:[%s1549 + $0x3a0] sm:$0xff]
    %v1667 = vld [vmem:[%s1549 + $0x3a8] sm:$0xff]
    %v1668 = vld [vmem:[%s1549 + $0x3b0] sm:$0xff]
    %v1669 = vld [vmem:[%s1549 + $0x3b8] sm:$0xff]
    %v1670 = vld [vmem:[%s1549 + $0x3c0] sm:$0xff]
    %v1671 = vld [vmem:[%s1549 + $0x3c8] sm:$0xff]
    %v1672 = vld [vmem:[%s1549 + $0x3d0] sm:$0xff]
    %v1673 = vld [vmem:[%s1549 + $0x3d8] sm:$0xff]
    %v1674 = vld [vmem:[%s1549 + $0x3e0] sm:$0xff]
    %v1675 = vld [vmem:[%s1549 + $0x3e8] sm:$0xff]
    %v1676 = vld [vmem:[%s1549 + $0x3f0] sm:$0xff]
    %v1677 = vld [vmem:[%s1549 + $0x3f8] sm:$0xff]
    %v1678 = vld [vmem:[%s1549 + $0x400] sm:$0xff]
    %v1679 = vld [vmem:[%s1549 + $0x408] sm:$0xff]
    %v1680 = vld [vmem:[%s1549 + $0x410] sm:$0xff]
    %v1681 = vld [vmem:[%s1549 + $0x418] sm:$0xff]
    %v1682 = vld [vmem:[%s1549 + $0x420] sm:$0xff]
    %v1683 = vld [vmem:[%s1549 + $0x428] sm:$0xff]
    %v1684 = vld [vmem:[%s1549 + $0x430] sm:$0xff]
    %v1685 = vld [vmem:[%s1549 + $0x438] sm:$0xff]
    %v1686 = vld [vmem:[%s1549 + $0x440] sm:$0xff]
    %v1687 = vld [vmem:[%s1549 + $0x448] sm:$0xff]
    %v1688 = vld [vmem:[%s1549 + $0x450] sm:$0xff]
    %v1689 = vld [vmem:[%s1549 + $0x458] sm:$0xff]
    %v1690 = vld [vmem:[%s1549 + $0x460] sm:$0xff]
    %v1691 = vld [vmem:[%s1549 + $0x468] sm:$0xff]
    %v1692 = vld [vmem:[%s1549 + $0x470] sm:$0xff]
    %v1693 = vld [vmem:[%s1549 + $0x478] sm:$0xff]
    %v1694 = vld [vmem:[%s1549 + $0x480] sm:$0xff]
    %v1695 = vld [vmem:[%s1549 + $0x488] sm:$0xff]
    %v1696 = vld [vmem:[%s1549 + $0x490] sm:$0xff]
    %v1697 = vld [vmem:[%s1549 + $0x498] sm:$0xff]
    %v1698 = vld [vmem:[%s1549 + $0x4a0] sm:$0xff]
    %v1699 = vld [vmem:[%s1549 + $0x4a8] sm:$0xff]
    %v1700 = vld [vmem:[%s1549 + $0x4b0] sm:$0xff]
    %v1701 = vld [vmem:[%s1549 + $0x4b8] sm:$0xff]
    %v1702 = vld [vmem:[%s1549 + $0x4c0] sm:$0xff]
    %v1703 = vld [vmem:[%s1549 + $0x4c8] sm:$0xff]
    %v1704 = vld [vmem:[%s1549 + $0x4d0] sm:$0xff]
    %v1705 = vld [vmem:[%s1549 + $0x4d8] sm:$0xff]
    %v1706 = vld [vmem:[%s1549 + $0x4e0] sm:$0xff]
    %v1707 = vld [vmem:[%s1549 + $0x4e8] sm:$0xff]
    %v1708 = vld [vmem:[%s1549 + $0x4f0] sm:$0xff]
    %v1709 = vld [vmem:[%s1549 + $0x4f8] sm:$0xff]
    %v1710 = vld [vmem:[%s1549 + $0x500] sm:$0xff]
    %v1711 = vld [vmem:[%s1549 + $0x508] sm:$0xff]
    %v1712 = vld [vmem:[%s1549 + $0x510] sm:$0xff]
    %v1713 = vld [vmem:[%s1549 + $0x518] sm:$0xff]
    %v1714 = vld [vmem:[%s1549 + $0x520] sm:$0xff]
    %v1715 = vld [vmem:[%s1549 + $0x528] sm:$0xff]
    %v1716 = vld [vmem:[%s1549 + $0x530] sm:$0xff]
    %v1717 = vld [vmem:[%s1549 + $0x538] sm:$0xff]
    %v1718 = vld [vmem:[%s1549 + $0x540] sm:$0xff]
    %v1719 = vld [vmem:[%s1549 + $0x548] sm:$0xff]
    %v1720 = vld [vmem:[%s1549 + $0x550] sm:$0xff]
    %v1721 = vld [vmem:[%s1549 + $0x558] sm:$0xff]
    %v1722 = vld [vmem:[%s1549 + $0x560] sm:$0xff]
    %v1723 = vld [vmem:[%s1549 + $0x568] sm:$0xff]
    %v1724 = vld [vmem:[%s1549 + $0x570] sm:$0xff]
    %v1725 = vld [vmem:[%s1549 + $0x578] sm:$0xff]
    %v1726 = vld [vmem:[%s1549 + $0x580] sm:$0xff]
    %v1727 = vld [vmem:[%s1549 + $0x588] sm:$0xff]
    %v1728 = vld [vmem:[%s1549 + $0x590] sm:$0xff]
    %v1729 = vld [vmem:[%s1549 + $0x598] sm:$0xff]
    %v1730 = vld [vmem:[%s1549 + $0x5a0] sm:$0xff]
    %v1731 = vld [vmem:[%s1549 + $0x5a8] sm:$0xff]
    %v1732 = vld [vmem:[%s1549 + $0x5b0] sm:$0xff]
    %v1733 = vld [vmem:[%s1549 + $0x5b8] sm:$0xff]
    %v1734 = vld [vmem:[%s1549 + $0x5c0] sm:$0xff]
    %v1735 = vld [vmem:[%s1549 + $0x5c8] sm:$0xff]
    %v1736 = vld [vmem:[%s1549 + $0x5d0] sm:$0xff]
    %v1737 = vld [vmem:[%s1549 + $0x5d8] sm:$0xff]
    %v1738 = vld [vmem:[%s1549 + $0x5e0] sm:$0xff]
    %v1739 = vld [vmem:[%s1549 + $0x5e8] sm:$0xff]
    %v1740 = vld [vmem:[%s1549 + $0x5f0] sm:$0xff]
    %v1741 = vld [vmem:[%s1549 + $0x5f8] sm:$0xff]
    %v1742 = vld [vmem:[%s1549 + $0x600] sm:$0xff]
    %v1743 = vld [vmem:[%s1549 + $0x608] sm:$0xff]
    %v1744 = vld [vmem:[%s1549 + $0x610] sm:$0xff]
    %v1745 = vld [vmem:[%s1549 + $0x618] sm:$0xff]
    %s1746 = scalar_lea.vmem [#allocation7], 6
    %v1747 = vld [vmem:[%s1746] sm:$0x3]
    %v1749 = vlaneseq
    %v1750 = vshrl.u32 %v1749, 7
    %v1751 = vsub.s32 0, %v1750
    %v1752 = vrot.slane %v1747, %v1751
    %v1753 = vlaneseq
    %v1754 = vshrl.u32 %v1753, 7
    %v1755 = vsub.s32 1, %v1754
    %v1756 = vrot.slane %v1747, %v1755
    %1759 = vmatprep.subr.mxu0 %v1551
    %1760 = vmatpush1.msra.mxu0 %v1550
    %1761 = vmatprep.subr.mxu0 %v1553
    %1762 = vmatpush1.msra.mxu0 %v1552
    %1763 = vmatprep.subr.mxu0 %v1555
    %1764 = vmatpush1.msra.mxu0 %v1554
    %1765 = vmatprep.subr.mxu0 %v1557
    %1766 = vmatpush1.msra.mxu0 %v1556
    %1767 = vmatprep.subr.mxu0 %v1559
    %1768 = vmatpush1.msra.mxu0 %v1558
    %1769 = vmatprep.subr.mxu0 %v1561
    %1770 = vmatpush1.msra.mxu0 %v1560
    %1771 = vmatprep.subr.mxu0 %v1563
    %1772 = vmatpush1.msra.mxu0 %v1562
    %1773 = vmatprep.subr.mxu0 %v1565
    %1774 = vmatpush1.msra.mxu0 %v1564
    %1775 = vmatprep.subr.mxu0 %v1567
    %1776 = vmatpush1.msra.mxu0 %v1566
    %1777 = vmatprep.subr.mxu0 %v1569
    %1778 = vmatpush1.msra.mxu0 %v1568
    %1779 = vmatprep.subr.mxu0 %v1571
    %1780 = vmatpush1.msra.mxu0 %v1570
    %1781 = vmatprep.subr.mxu0 %v1573
    %1782 = vmatpush1.msra.mxu0 %v1572
    %1783 = vmatprep.subr.mxu0 %v1575
    %1784 = vmatpush1.msra.mxu0 %v1574
    %1785 = vmatprep.subr.mxu0 %v1577
    %1786 = vmatpush1.msra.mxu0 %v1576
    %1787 = vmatprep.subr.mxu0 %v1579
    %1788 = vmatpush1.msra.mxu0 %v1578
    %1789 = vmatprep.subr.mxu0 %v1581
    %1790 = vmatpush1.msra.mxu0 %v1580
    %1791 = vmatprep.subr.mxu0 %v1583
    %1792 = vmatpush1.msra.mxu0 %v1582
    %1793 = vmatprep.subr.mxu0 %v1585
    %1794 = vmatpush1.msra.mxu0 %v1584
    %1795 = vmatprep.subr.mxu0 %v1587
    %1796 = vmatpush1.msra.mxu0 %v1586
    %1797 = vmatprep.subr.mxu0 %v1589
    %1798 = vmatpush1.msra.mxu0 %v1588
    %1799 = vmatprep.subr.mxu0 %v1591
    %1800 = vmatpush1.msra.mxu0 %v1590
    %1801 = vmatprep.subr.mxu0 %v1593
    %1802 = vmatpush1.msra.mxu0 %v1592
    %1803 = vmatprep.subr.mxu0 %v1595
    %1804 = vmatpush1.msra.mxu0 %v1594
    %1805 = vmatprep.subr.mxu0 %v1597
    %1806 = vmatpush1.msra.mxu0 %v1596
    %1807 = vmatprep.subr.mxu0 %v1599
    %1808 = vmatpush1.msra.mxu0 %v1598
    %1809 = vmatprep.subr.mxu0 %v1601
    %1810 = vmatpush1.msra.mxu0 %v1600
    %1811 = vmatprep.subr.mxu0 %v1603
    %1812 = vmatpush1.msra.mxu0 %v1602
    %1813 = vmatprep.subr.mxu0 %v1605
    %1814 = vmatpush1.msra.mxu0 %v1604
    %1815 = vmatprep.subr.mxu0 %v1607
    %1816 = vmatpush1.msra.mxu0 %v1606
    %1817 = vmatprep.subr.mxu0 %v1609
    %1818 = vmatpush1.msra.mxu0 %v1608
    %1819 = vmatprep.subr.mxu0 %v1611
    %1820 = vmatpush1.msra.mxu0 %v1610
    %1821 = vmatprep.subr.mxu0 %v1613
    %1822 = vmatpush1.msra.mxu0 %v1612
    %1823 = vmatprep.mubr.f32.mxu0 %v55
    %1824 = vmatmul.mubr.f32.gmra.mrb[0].mxu0 %v54
    %v1825 = vpop.f32.mrb[0].mxu0
    %v1826 = vadd.f32 %v1752, %v1825
    %v1827 = vpop.f32.mrb[0].mxu0
    %v1828 = vadd.f32 %v1756, %v1827
    %1829 = vdwg.mxu0
    %1830 = vmatprep.subr.mxu0 %v1615
    %1831 = vmatpush1.msra.mxu0 %v1614
    %1832 = vmatprep.subr.mxu0 %v1617
    %1833 = vmatpush1.msra.mxu0 %v1616
    %1834 = vmatprep.subr.mxu0 %v1619
    %1835 = vmatpush1.msra.mxu0 %v1618
    %1836 = vmatprep.subr.mxu0 %v1621
    %1837 = vmatpush1.msra.mxu0 %v1620
    %1838 = vmatprep.subr.mxu0 %v1623
    %1839 = vmatpush1.msra.mxu0 %v1622
    %1840 = vmatprep.subr.mxu0 %v1625
    %1841 = vmatpush1.msra.mxu0 %v1624
    %1842 = vmatprep.subr.mxu0 %v1627
    %1843 = vmatpush1.msra.mxu0 %v1626
    %1844 = vmatprep.subr.mxu0 %v1629
    %1845 = vmatpush1.msra.mxu0 %v1628
    %1846 = vmatprep.subr.mxu0 %v1631
    %1847 = vmatpush1.msra.mxu0 %v1630
    %1848 = vmatprep.subr.mxu0 %v1633
    %1849 = vmatpush1.msra.mxu0 %v1632
    %1850 = vmatprep.subr.mxu0 %v1635
    %1851 = vmatpush1.msra.mxu0 %v1634
    %1852 = vmatprep.subr.mxu0 %v1637
    %1853 = vmatpush1.msra.mxu0 %v1636
    %1854 = vmatprep.subr.mxu0 %v1639
    %1855 = vmatpush1.msra.mxu0 %v1638
    %1856 = vmatprep.subr.mxu0 %v1641
    %1857 = vmatpush1.msra.mxu0 %v1640
    %1858 = vmatprep.subr.mxu0 %v1643
    %1859 = vmatpush1.msra.mxu0 %v1642
    %1860 = vmatprep.subr.mxu0 %v1645
    %1861 = vmatpush1.msra.mxu0 %v1644
    %1862 = vmatprep.subr.mxu0 %v1647
    %1863 = vmatpush1.msra.mxu0 %v1646
    %1864 = vmatprep.subr.mxu0 %v1649
    %1865 = vmatpush1.msra.mxu0 %v1648
    %1866 = vmatprep.subr.mxu0 %v1651
    %1867 = vmatpush1.msra.mxu0 %v1650
    %1868 = vmatprep.subr.mxu0 %v1653
    %1869 = vmatpush1.msra.mxu0 %v1652
    %1870 = vmatprep.subr.mxu0 %v1655
    %1871 = vmatpush1.msra.mxu0 %v1654
    %1872 = vmatprep.subr.mxu0 %v1657
    %1873 = vmatpush1.msra.mxu0 %v1656
    %1874 = vmatprep.subr.mxu0 %v1659
    %1875 = vmatpush1.msra.mxu0 %v1658
    %1876 = vmatprep.subr.mxu0 %v1661
    %1877 = vmatpush1.msra.mxu0 %v1660
    %1878 = vmatprep.subr.mxu0 %v1663
    %1879 = vmatpush1.msra.mxu0 %v1662
    %1880 = vmatprep.subr.mxu0 %v1665
    %1881 = vmatpush1.msra.mxu0 %v1664
    %1882 = vmatprep.subr.mxu0 %v1667
    %1883 = vmatpush1.msra.mxu0 %v1666
    %1884 = vmatprep.subr.mxu0 %v1669
    %1885 = vmatpush1.msra.mxu0 %v1668
    %1886 = vmatprep.subr.mxu0 %v1671
    %1887 = vmatpush1.msra.mxu0 %v1670
    %1888 = vmatprep.subr.mxu0 %v1673
    %1889 = vmatpush1.msra.mxu0 %v1672
    %1890 = vmatprep.subr.mxu0 %v1675
    %1891 = vmatpush1.msra.mxu0 %v1674
    %1892 = vmatprep.subr.mxu0 %v1677
    %1893 = vmatpush1.msra.mxu0 %v1676
    %1894 = vmatprep.mubr.f32.mxu0 %v57
    %1895 = vmatmul.mubr.f32.gmra.mrb[0].mxu0 %v56
    %v1896 = vpop.f32.mrb[0].mxu0
    %v1897 = vadd.f32 %v1826, %v1896
    %v1898 = vpop.f32.mrb[0].mxu0
    %v1899 = vadd.f32 %v1828, %v1898
    %1900 = vdwg.mxu0
    %1901 = vmatprep.subr.mxu0 %v1679
    %1902 = vmatpush1.msra.mxu0 %v1678
    %1903 = vmatprep.subr.mxu0 %v1681
    %1904 = vmatpush1.msra.mxu0 %v1680
    %1905 = vmatprep.subr.mxu0 %v1683
    %1906 = vmatpush1.msra.mxu0 %v1682
    %1907 = vmatprep.subr.mxu0 %v1685
    %1908 = vmatpush1.msra.mxu0 %v1684
    %1909 = vmatprep.subr.mxu0 %v1687
    %1910 = vmatpush1.msra.mxu0 %v1686
    %1911 = vmatprep.subr.mxu0 %v1689
    %1912 = vmatpush1.msra.mxu0 %v1688
    %1913 = vmatprep.subr.mxu0 %v1691
    %1914 = vmatpush1.msra.mxu0 %v1690
    %1915 = vmatprep.subr.mxu0 %v1693
    %1916 = vmatpush1.msra.mxu0 %v1692
    %1917 = vmatprep.subr.mxu0 %v1695
    %1918 = vmatpush1.msra.mxu0 %v1694
    %1919 = vmatprep.subr.mxu0 %v1697
    %1920 = vmatpush1.msra.mxu0 %v1696
    %1921 = vmatprep.subr.mxu0 %v1699
    %1922 = vmatpush1.msra.mxu0 %v1698
    %1923 = vmatprep.subr.mxu0 %v1701
    %1924 = vmatpush1.msra.mxu0 %v1700
    %1925 = vmatprep.subr.mxu0 %v1703
    %1926 = vmatpush1.msra.mxu0 %v1702
    %1927 = vmatprep.subr.mxu0 %v1705
    %1928 = vmatpush1.msra.mxu0 %v1704
    %1929 = vmatprep.subr.mxu0 %v1707
    %1930 = vmatpush1.msra.mxu0 %v1706
    %1931 = vmatprep.subr.mxu0 %v1709
    %1932 = vmatpush1.msra.mxu0 %v1708
    %1933 = vmatprep.subr.mxu0 %v1711
    %1934 = vmatpush1.msra.mxu0 %v1710
    %1935 = vmatprep.subr.mxu0 %v1713
    %1936 = vmatpush1.msra.mxu0 %v1712
    %1937 = vmatprep.subr.mxu0 %v1715
    %1938 = vmatpush1.msra.mxu0 %v1714
    %1939 = vmatprep.subr.mxu0 %v1717
    %1940 = vmatpush1.msra.mxu0 %v1716
    %1941 = vmatprep.subr.mxu0 %v1719
    %1942 = vmatpush1.msra.mxu0 %v1718
    %1943 = vmatprep.subr.mxu0 %v1721
    %1944 = vmatpush1.msra.mxu0 %v1720
    %1945 = vmatprep.subr.mxu0 %v1723
    %1946 = vmatpush1.msra.mxu0 %v1722
    %1947 = vmatprep.subr.mxu0 %v1725
    %1948 = vmatpush1.msra.mxu0 %v1724
    %1949 = vmatprep.subr.mxu0 %v1727
    %1950 = vmatpush1.msra.mxu0 %v1726
    %1951 = vmatprep.subr.mxu0 %v1729
    %1952 = vmatpush1.msra.mxu0 %v1728
    %1953 = vmatprep.subr.mxu0 %v1731
    %1954 = vmatpush1.msra.mxu0 %v1730
    %1955 = vmatprep.subr.mxu0 %v1733
    %1956 = vmatpush1.msra.mxu0 %v1732
    %1957 = vmatprep.subr.mxu0 %v1735
    %1958 = vmatpush1.msra.mxu0 %v1734
    %1959 = vmatprep.subr.mxu0 %v1737
    %1960 = vmatpush1.msra.mxu0 %v1736
    %1961 = vmatprep.subr.mxu0 %v1739
    %1962 = vmatpush1.msra.mxu0 %v1738
    %1963 = vmatprep.subr.mxu0 %v1741
    %1964 = vmatpush1.msra.mxu0 %v1740
    %1965 = vmatprep.mubr.f32.mxu0 %v59
    %1966 = vmatmul.mubr.f32.gmra.mrb[0].mxu0 %v58
    %v1967 = vpop.f32.mrb[0].mxu0
    %v1968 = vadd.f32 %v1897, %v1967
    %v1969 = vpop.f32.mrb[0].mxu0
    %v1970 = vadd.f32 %v1899, %v1969
    %1971 = vdwg.mxu0
    %1972 = vmatprep.subr.mxu0 %v1743
    %1973 = vmatpush1.msra.mxu0 %v1742
    %1974 = vmatprep.subr.mxu0 %v1745
    %1975 = vmatpush1.msra.mxu0 %v1744
    %1976 = vmatprep.subr.mxu0 0.0
    %1977 = vmatpush1.msra.mxu0 0.0
    %1978 = vmatprep.subr.mxu0 0.0
    %1979 = vmatpush1.msra.mxu0 0.0
    %1980 = vmatprep.subr.mxu0 0.0
    %1981 = vmatpush1.msra.mxu0 0.0
    %1982 = vmatprep.subr.mxu0 0.0
    %1983 = vmatpush1.msra.mxu0 0.0
    %1984 = vmatprep.subr.mxu0 0.0
    %1985 = vmatpush1.msra.mxu0 0.0
    %1986 = vmatprep.subr.mxu0 0.0
    %1987 = vmatpush1.msra.mxu0 0.0
    %1988 = vmatprep.subr.mxu0 0.0
    %1989 = vmatpush1.msra.mxu0 0.0
    %1990 = vmatprep.subr.mxu0 0.0
    %1991 = vmatpush1.msra.mxu0 0.0
    %1992 = vmatprep.subr.mxu0 0.0
    %1993 = vmatpush1.msra.mxu0 0.0
    %1994 = vmatprep.subr.mxu0 0.0
    %1995 = vmatpush1.msra.mxu0 0.0
    %1996 = vmatprep.subr.mxu0 0.0
    %1997 = vmatpush1.msra.mxu0 0.0
    %1998 = vmatprep.subr.mxu0 0.0
    %1999 = vmatpush1.msra.mxu0 0.0
    %2000 = vmatprep.subr.mxu0 0.0
    %2001 = vmatpush1.msra.mxu0 0.0
    %2002 = vmatprep.subr.mxu0 0.0
    %2003 = vmatpush1.msra.mxu0 0.0
    %2004 = vmatprep.subr.mxu0 0.0
    %2005 = vmatpush1.msra.mxu0 0.0
    %2006 = vmatprep.subr.mxu0 0.0
    %2007 = vmatpush1.msra.mxu0 0.0
    %2008 = vmatprep.subr.mxu0 0.0
    %2009 = vmatpush1.msra.mxu0 0.0
    %2010 = vmatprep.subr.mxu0 0.0
    %2011 = vmatpush1.msra.mxu0 0.0
    %2012 = vmatprep.subr.mxu0 0.0
    %2013 = vmatpush1.msra.mxu0 0.0
    %2014 = vmatprep.subr.mxu0 0.0
    %2015 = vmatpush1.msra.mxu0 0.0
    %2016 = vmatprep.subr.mxu0 0.0
    %2017 = vmatpush1.msra.mxu0 0.0
    %2018 = vmatprep.subr.mxu0 0.0
    %2019 = vmatpush1.msra.mxu0 0.0
    %2020 = vmatprep.subr.mxu0 0.0
    %2021 = vmatpush1.msra.mxu0 0.0
    %2022 = vmatprep.subr.mxu0 0.0
    %2023 = vmatpush1.msra.mxu0 0.0
    %2024 = vmatprep.subr.mxu0 0.0
    %2025 = vmatpush1.msra.mxu0 0.0
    %2026 = vmatprep.subr.mxu0 0.0
    %2027 = vmatpush1.msra.mxu0 0.0
    %2028 = vmatprep.subr.mxu0 0.0
    %2029 = vmatpush1.msra.mxu0 0.0
    %2030 = vmatprep.subr.mxu0 0.0
    %2031 = vmatpush1.msra.mxu0 0.0
    %2032 = vmatprep.subr.mxu0 0.0
    %2033 = vmatpush1.msra.mxu0 0.0
    %2034 = vmatprep.subr.mxu0 0.0
    %2035 = vmatpush1.msra.mxu0 0.0
    %2036 = vmatprep.mubr.f32.mxu0 0.0
    %2037 = vmatmul.mubr.f32.gmra.mrb[0].mxu0 %v271
    %v2038 = vpop.f32.mrb[0].mxu0
    %v2039 = vadd.f32 %v1968, %v2038
    %v2040 = vpop.f32.mrb[0].mxu0
    %v2041 = vadd.f32 %v1970, %v2040
    %2042 = vdwg.mxu0
    %v2043 = vmax.f32 %v1547, %v2039
    %v2044 = vmax.f32 %v1548, %v2041
    %s2045 = scalar_lea.vmem [#allocation5], 6272
    %v2046 = vld [vmem:[%s2045] sm:$0xff]
    %v2047 = vld [vmem:[%s2045 + $0x8] sm:$0xff]
    %v2048 = vld [vmem:[%s2045 + $0x10] sm:$0xff]
    %v2049 = vld [vmem:[%s2045 + $0x18] sm:$0xff]
    %v2050 = vld [vmem:[%s2045 + $0x20] sm:$0xff]
    %v2051 = vld [vmem:[%s2045 + $0x28] sm:$0xff]
    %v2052 = vld [vmem:[%s2045 + $0x30] sm:$0xff]
    %v2053 = vld [vmem:[%s2045 + $0x38] sm:$0xff]
    %v2054 = vld [vmem:[%s2045 + $0x40] sm:$0xff]
    %v2055 = vld [vmem:[%s2045 + $0x48] sm:$0xff]
    %v2056 = vld [vmem:[%s2045 + $0x50] sm:$0xff]
    %v2057 = vld [vmem:[%s2045 + $0x58] sm:$0xff]
    %v2058 = vld [vmem:[%s2045 + $0x60] sm:$0xff]
    %v2059 = vld [vmem:[%s2045 + $0x68] sm:$0xff]
    %v2060 = vld [vmem:[%s2045 + $0x70] sm:$0xff]
    %v2061 = vld [vmem:[%s2045 + $0x78] sm:$0xff]
    %v2062 = vld [vmem:[%s2045 + $0x80] sm:$0xff]
    %v2063 = vld [vmem:[%s2045 + $0x88] sm:$0xff]
    %v2064 = vld [vmem:[%s2045 + $0x90] sm:$0xff]
    %v2065 = vld [vmem:[%s2045 + $0x98] sm:$0xff]
    %v2066 = vld [vmem:[%s2045 + $0xa0] sm:$0xff]
    %v2067 = vld [vmem:[%s2045 + $0xa8] sm:$0xff]
    %v2068 = vld [vmem:[%s2045 + $0xb0] sm:$0xff]
    %v2069 = vld [vmem:[%s2045 + $0xb8] sm:$0xff]
    %v2070 = vld [vmem:[%s2045 + $0xc0] sm:$0xff]
    %v2071 = vld [vmem:[%s2045 + $0xc8] sm:$0xff]
    %v2072 = vld [vmem:[%s2045 + $0xd0] sm:$0xff]
    %v2073 = vld [vmem:[%s2045 + $0xd8] sm:$0xff]
    %v2074 = vld [vmem:[%s2045 + $0xe0] sm:$0xff]
    %v2075 = vld [vmem:[%s2045 + $0xe8] sm:$0xff]
    %v2076 = vld [vmem:[%s2045 + $0xf0] sm:$0xff]
    %v2077 = vld [vmem:[%s2045 + $0xf8] sm:$0xff]
    %v2078 = vld [vmem:[%s2045 + $0x100] sm:$0xff]
    %v2079 = vld [vmem:[%s2045 + $0x108] sm:$0xff]
    %v2080 = vld [vmem:[%s2045 + $0x110] sm:$0xff]
    %v2081 = vld [vmem:[%s2045 + $0x118] sm:$0xff]
    %v2082 = vld [vmem:[%s2045 + $0x120] sm:$0xff]
    %v2083 = vld [vmem:[%s2045 + $0x128] sm:$0xff]
    %v2084 = vld [vmem:[%s2045 + $0x130] sm:$0xff]
    %v2085 = vld [vmem:[%s2045 + $0x138] sm:$0xff]
    %v2086 = vld [vmem:[%s2045 + $0x140] sm:$0xff]
    %v2087 = vld [vmem:[%s2045 + $0x148] sm:$0xff]
    %v2088 = vld [vmem:[%s2045 + $0x150] sm:$0xff]
    %v2089 = vld [vmem:[%s2045 + $0x158] sm:$0xff]
    %v2090 = vld [vmem:[%s2045 + $0x160] sm:$0xff]
    %v2091 = vld [vmem:[%s2045 + $0x168] sm:$0xff]
    %v2092 = vld [vmem:[%s2045 + $0x170] sm:$0xff]
    %v2093 = vld [vmem:[%s2045 + $0x178] sm:$0xff]
    %v2094 = vld [vmem:[%s2045 + $0x180] sm:$0xff]
    %v2095 = vld [vmem:[%s2045 + $0x188] sm:$0xff]
    %v2096 = vld [vmem:[%s2045 + $0x190] sm:$0xff]
    %v2097 = vld [vmem:[%s2045 + $0x198] sm:$0xff]
    %v2098 = vld [vmem:[%s2045 + $0x1a0] sm:$0xff]
    %v2099 = vld [vmem:[%s2045 + $0x1a8] sm:$0xff]
    %v2100 = vld [vmem:[%s2045 + $0x1b0] sm:$0xff]
    %v2101 = vld [vmem:[%s2045 + $0x1b8] sm:$0xff]
    %v2102 = vld [vmem:[%s2045 + $0x1c0] sm:$0xff]
    %v2103 = vld [vmem:[%s2045 + $0x1c8] sm:$0xff]
    %v2104 = vld [vmem:[%s2045 + $0x1d0] sm:$0xff]
    %v2105 = vld [vmem:[%s2045 + $0x1d8] sm:$0xff]
    %v2106 = vld [vmem:[%s2045 + $0x1e0] sm:$0xff]
    %v2107 = vld [vmem:[%s2045 + $0x1e8] sm:$0xff]
    %v2108 = vld [vmem:[%s2045 + $0x1f0] sm:$0xff]
    %v2109 = vld [vmem:[%s2045 + $0x1f8] sm:$0xff]
    %v2110 = vld [vmem:[%s2045 + $0x200] sm:$0xff]
    %v2111 = vld [vmem:[%s2045 + $0x208] sm:$0xff]
    %v2112 = vld [vmem:[%s2045 + $0x210] sm:$0xff]
    %v2113 = vld [vmem:[%s2045 + $0x218] sm:$0xff]
    %v2114 = vld [vmem:[%s2045 + $0x220] sm:$0xff]
    %v2115 = vld [vmem:[%s2045 + $0x228] sm:$0xff]
    %v2116 = vld [vmem:[%s2045 + $0x230] sm:$0xff]
    %v2117 = vld [vmem:[%s2045 + $0x238] sm:$0xff]
    %v2118 = vld [vmem:[%s2045 + $0x240] sm:$0xff]
    %v2119 = vld [vmem:[%s2045 + $0x248] sm:$0xff]
    %v2120 = vld [vmem:[%s2045 + $0x250] sm:$0xff]
    %v2121 = vld [vmem:[%s2045 + $0x258] sm:$0xff]
    %v2122 = vld [vmem:[%s2045 + $0x260] sm:$0xff]
    %v2123 = vld [vmem:[%s2045 + $0x268] sm:$0xff]
    %v2124 = vld [vmem:[%s2045 + $0x270] sm:$0xff]
    %v2125 = vld [vmem:[%s2045 + $0x278] sm:$0xff]
    %v2126 = vld [vmem:[%s2045 + $0x280] sm:$0xff]
    %v2127 = vld [vmem:[%s2045 + $0x288] sm:$0xff]
    %v2128 = vld [vmem:[%s2045 + $0x290] sm:$0xff]
    %v2129 = vld [vmem:[%s2045 + $0x298] sm:$0xff]
    %v2130 = vld [vmem:[%s2045 + $0x2a0] sm:$0xff]
    %v2131 = vld [vmem:[%s2045 + $0x2a8] sm:$0xff]
    %v2132 = vld [vmem:[%s2045 + $0x2b0] sm:$0xff]
    %v2133 = vld [vmem:[%s2045 + $0x2b8] sm:$0xff]
    %v2134 = vld [vmem:[%s2045 + $0x2c0] sm:$0xff]
    %v2135 = vld [vmem:[%s2045 + $0x2c8] sm:$0xff]
    %v2136 = vld [vmem:[%s2045 + $0x2d0] sm:$0xff]
    %v2137 = vld [vmem:[%s2045 + $0x2d8] sm:$0xff]
    %v2138 = vld [vmem:[%s2045 + $0x2e0] sm:$0xff]
    %v2139 = vld [vmem:[%s2045 + $0x2e8] sm:$0xff]
    %v2140 = vld [vmem:[%s2045 + $0x2f0] sm:$0xff]
    %v2141 = vld [vmem:[%s2045 + $0x2f8] sm:$0xff]
    %v2142 = vld [vmem:[%s2045 + $0x300] sm:$0xff]
    %v2143 = vld [vmem:[%s2045 + $0x308] sm:$0xff]
    %v2144 = vld [vmem:[%s2045 + $0x310] sm:$0xff]
    %v2145 = vld [vmem:[%s2045 + $0x318] sm:$0xff]
    %v2146 = vld [vmem:[%s2045 + $0x320] sm:$0xff]
    %v2147 = vld [vmem:[%s2045 + $0x328] sm:$0xff]
    %v2148 = vld [vmem:[%s2045 + $0x330] sm:$0xff]
    %v2149 = vld [vmem:[%s2045 + $0x338] sm:$0xff]
    %v2150 = vld [vmem:[%s2045 + $0x340] sm:$0xff]
    %v2151 = vld [vmem:[%s2045 + $0x348] sm:$0xff]
    %v2152 = vld [vmem:[%s2045 + $0x350] sm:$0xff]
    %v2153 = vld [vmem:[%s2045 + $0x358] sm:$0xff]
    %v2154 = vld [vmem:[%s2045 + $0x360] sm:$0xff]
    %v2155 = vld [vmem:[%s2045 + $0x368] sm:$0xff]
    %v2156 = vld [vmem:[%s2045 + $0x370] sm:$0xff]
    %v2157 = vld [vmem:[%s2045 + $0x378] sm:$0xff]
    %v2158 = vld [vmem:[%s2045 + $0x380] sm:$0xff]
    %v2159 = vld [vmem:[%s2045 + $0x388] sm:$0xff]
    %v2160 = vld [vmem:[%s2045 + $0x390] sm:$0xff]
    %v2161 = vld [vmem:[%s2045 + $0x398] sm:$0xff]
    %v2162 = vld [vmem:[%s2045 + $0x3a0] sm:$0xff]
    %v2163 = vld [vmem:[%s2045 + $0x3a8] sm:$0xff]
    %v2164 = vld [vmem:[%s2045 + $0x3b0] sm:$0xff]
    %v2165 = vld [vmem:[%s2045 + $0x3b8] sm:$0xff]
    %v2166 = vld [vmem:[%s2045 + $0x3c0] sm:$0xff]
    %v2167 = vld [vmem:[%s2045 + $0x3c8] sm:$0xff]
    %v2168 = vld [vmem:[%s2045 + $0x3d0] sm:$0xff]
    %v2169 = vld [vmem:[%s2045 + $0x3d8] sm:$0xff]
    %v2170 = vld [vmem:[%s2045 + $0x3e0] sm:$0xff]
    %v2171 = vld [vmem:[%s2045 + $0x3e8] sm:$0xff]
    %v2172 = vld [vmem:[%s2045 + $0x3f0] sm:$0xff]
    %v2173 = vld [vmem:[%s2045 + $0x3f8] sm:$0xff]
    %v2174 = vld [vmem:[%s2045 + $0x400] sm:$0xff]
    %v2175 = vld [vmem:[%s2045 + $0x408] sm:$0xff]
    %v2176 = vld [vmem:[%s2045 + $0x410] sm:$0xff]
    %v2177 = vld [vmem:[%s2045 + $0x418] sm:$0xff]
    %v2178 = vld [vmem:[%s2045 + $0x420] sm:$0xff]
    %v2179 = vld [vmem:[%s2045 + $0x428] sm:$0xff]
    %v2180 = vld [vmem:[%s2045 + $0x430] sm:$0xff]
    %v2181 = vld [vmem:[%s2045 + $0x438] sm:$0xff]
    %v2182 = vld [vmem:[%s2045 + $0x440] sm:$0xff]
    %v2183 = vld [vmem:[%s2045 + $0x448] sm:$0xff]
    %v2184 = vld [vmem:[%s2045 + $0x450] sm:$0xff]
    %v2185 = vld [vmem:[%s2045 + $0x458] sm:$0xff]
    %v2186 = vld [vmem:[%s2045 + $0x460] sm:$0xff]
    %v2187 = vld [vmem:[%s2045 + $0x468] sm:$0xff]
    %v2188 = vld [vmem:[%s2045 + $0x470] sm:$0xff]
    %v2189 = vld [vmem:[%s2045 + $0x478] sm:$0xff]
    %v2190 = vld [vmem:[%s2045 + $0x480] sm:$0xff]
    %v2191 = vld [vmem:[%s2045 + $0x488] sm:$0xff]
    %v2192 = vld [vmem:[%s2045 + $0x490] sm:$0xff]
    %v2193 = vld [vmem:[%s2045 + $0x498] sm:$0xff]
    %v2194 = vld [vmem:[%s2045 + $0x4a0] sm:$0xff]
    %v2195 = vld [vmem:[%s2045 + $0x4a8] sm:$0xff]
    %v2196 = vld [vmem:[%s2045 + $0x4b0] sm:$0xff]
    %v2197 = vld [vmem:[%s2045 + $0x4b8] sm:$0xff]
    %v2198 = vld [vmem:[%s2045 + $0x4c0] sm:$0xff]
    %v2199 = vld [vmem:[%s2045 + $0x4c8] sm:$0xff]
    %v2200 = vld [vmem:[%s2045 + $0x4d0] sm:$0xff]
    %v2201 = vld [vmem:[%s2045 + $0x4d8] sm:$0xff]
    %v2202 = vld [vmem:[%s2045 + $0x4e0] sm:$0xff]
    %v2203 = vld [vmem:[%s2045 + $0x4e8] sm:$0xff]
    %v2204 = vld [vmem:[%s2045 + $0x4f0] sm:$0xff]
    %v2205 = vld [vmem:[%s2045 + $0x4f8] sm:$0xff]
    %v2206 = vld [vmem:[%s2045 + $0x500] sm:$0xff]
    %v2207 = vld [vmem:[%s2045 + $0x508] sm:$0xff]
    %v2208 = vld [vmem:[%s2045 + $0x510] sm:$0xff]
    %v2209 = vld [vmem:[%s2045 + $0x518] sm:$0xff]
    %v2210 = vld [vmem:[%s2045 + $0x520] sm:$0xff]
    %v2211 = vld [vmem:[%s2045 + $0x528] sm:$0xff]
    %v2212 = vld [vmem:[%s2045 + $0x530] sm:$0xff]
    %v2213 = vld [vmem:[%s2045 + $0x538] sm:$0xff]
    %v2214 = vld [vmem:[%s2045 + $0x540] sm:$0xff]
    %v2215 = vld [vmem:[%s2045 + $0x548] sm:$0xff]
    %v2216 = vld [vmem:[%s2045 + $0x550] sm:$0xff]
    %v2217 = vld [vmem:[%s2045 + $0x558] sm:$0xff]
    %v2218 = vld [vmem:[%s2045 + $0x560] sm:$0xff]
    %v2219 = vld [vmem:[%s2045 + $0x568] sm:$0xff]
    %v2220 = vld [vmem:[%s2045 + $0x570] sm:$0xff]
    %v2221 = vld [vmem:[%s2045 + $0x578] sm:$0xff]
    %v2222 = vld [vmem:[%s2045 + $0x580] sm:$0xff]
    %v2223 = vld [vmem:[%s2045 + $0x588] sm:$0xff]
    %v2224 = vld [vmem:[%s2045 + $0x590] sm:$0xff]
    %v2225 = vld [vmem:[%s2045 + $0x598] sm:$0xff]
    %v2226 = vld [vmem:[%s2045 + $0x5a0] sm:$0xff]
    %v2227 = vld [vmem:[%s2045 + $0x5a8] sm:$0xff]
    %v2228 = vld [vmem:[%s2045 + $0x5b0] sm:$0xff]
    %v2229 = vld [vmem:[%s2045 + $0x5b8] sm:$0xff]
    %v2230 = vld [vmem:[%s2045 + $0x5c0] sm:$0xff]
    %v2231 = vld [vmem:[%s2045 + $0x5c8] sm:$0xff]
    %v2232 = vld [vmem:[%s2045 + $0x5d0] sm:$0xff]
    %v2233 = vld [vmem:[%s2045 + $0x5d8] sm:$0xff]
    %v2234 = vld [vmem:[%s2045 + $0x5e0] sm:$0xff]
    %v2235 = vld [vmem:[%s2045 + $0x5e8] sm:$0xff]
    %v2236 = vld [vmem:[%s2045 + $0x5f0] sm:$0xff]
    %v2237 = vld [vmem:[%s2045 + $0x5f8] sm:$0xff]
    %v2238 = vld [vmem:[%s2045 + $0x600] sm:$0xff]
    %v2239 = vld [vmem:[%s2045 + $0x608] sm:$0xff]
    %v2240 = vld [vmem:[%s2045 + $0x610] sm:$0xff]
    %v2241 = vld [vmem:[%s2045 + $0x618] sm:$0xff]
    %s2242 = scalar_lea.vmem [#allocation7], 8
    %v2243 = vld [vmem:[%s2242] sm:$0x3]
    %v2245 = vlaneseq
    %v2246 = vshrl.u32 %v2245, 7
    %v2247 = vsub.s32 0, %v2246
    %v2248 = vrot.slane %v2243, %v2247
    %v2249 = vlaneseq
    %v2250 = vshrl.u32 %v2249, 7
    %v2251 = vsub.s32 1, %v2250
    %v2252 = vrot.slane %v2243, %v2251
    %2255 = vmatprep.subr.mxu0 %v2047
    %2256 = vmatpush1.msra.mxu0 %v2046
    %2257 = vmatprep.subr.mxu0 %v2049
    %2258 = vmatpush1.msra.mxu0 %v2048
    %2259 = vmatprep.subr.mxu0 %v2051
    %2260 = vmatpush1.msra.mxu0 %v2050
    %2261 = vmatprep.subr.mxu0 %v2053
    %2262 = vmatpush1.msra.mxu0 %v2052
    %2263 = vmatprep.subr.mxu0 %v2055
    %2264 = vmatpush1.msra.mxu0 %v2054
    %2265 = vmatprep.subr.mxu0 %v2057
    %2266 = vmatpush1.msra.mxu0 %v2056
    %2267 = vmatprep.subr.mxu0 %v2059
    %2268 = vmatpush1.msra.mxu0 %v2058
    %2269 = vmatprep.subr.mxu0 %v2061
    %2270 = vmatpush1.msra.mxu0 %v2060
    %2271 = vmatprep.subr.mxu0 %v2063
    %2272 = vmatpush1.msra.mxu0 %v2062
    %2273 = vmatprep.subr.mxu0 %v2065
    %2274 = vmatpush1.msra.mxu0 %v2064
    %2275 = vmatprep.subr.mxu0 %v2067
    %2276 = vmatpush1.msra.mxu0 %v2066
    %2277 = vmatprep.subr.mxu0 %v2069
    %2278 = vmatpush1.msra.mxu0 %v2068
    %2279 = vmatprep.subr.mxu0 %v2071
    %2280 = vmatpush1.msra.mxu0 %v2070
    %2281 = vmatprep.subr.mxu0 %v2073
    %2282 = vmatpush1.msra.mxu0 %v2072
    %2283 = vmatprep.subr.mxu0 %v2075
    %2284 = vmatpush1.msra.mxu0 %v2074
    %2285 = vmatprep.subr.mxu0 %v2077
    %2286 = vmatpush1.msra.mxu0 %v2076
    %2287 = vmatprep.subr.mxu0 %v2079
    %2288 = vmatpush1.msra.mxu0 %v2078
    %2289 = vmatprep.subr.mxu0 %v2081
    %2290 = vmatpush1.msra.mxu0 %v2080
    %2291 = vmatprep.subr.mxu0 %v2083
    %2292 = vmatpush1.msra.mxu0 %v2082
    %2293 = vmatprep.subr.mxu0 %v2085
    %2294 = vmatpush1.msra.mxu0 %v2084
    %2295 = vmatprep.subr.mxu0 %v2087
    %2296 = vmatpush1.msra.mxu0 %v2086
    %2297 = vmatprep.subr.mxu0 %v2089
    %2298 = vmatpush1.msra.mxu0 %v2088
    %2299 = vmatprep.subr.mxu0 %v2091
    %2300 = vmatpush1.msra.mxu0 %v2090
    %2301 = vmatprep.subr.mxu0 %v2093
    %2302 = vmatpush1.msra.mxu0 %v2092
    %2303 = vmatprep.subr.mxu0 %v2095
    %2304 = vmatpush1.msra.mxu0 %v2094
    %2305 = vmatprep.subr.mxu0 %v2097
    %2306 = vmatpush1.msra.mxu0 %v2096
    %2307 = vmatprep.subr.mxu0 %v2099
    %2308 = vmatpush1.msra.mxu0 %v2098
    %2309 = vmatprep.subr.mxu0 %v2101
    %2310 = vmatpush1.msra.mxu0 %v2100
    %2311 = vmatprep.subr.mxu0 %v2103
    %2312 = vmatpush1.msra.mxu0 %v2102
    %2313 = vmatprep.subr.mxu0 %v2105
    %2314 = vmatpush1.msra.mxu0 %v2104
    %2315 = vmatprep.subr.mxu0 %v2107
    %2316 = vmatpush1.msra.mxu0 %v2106
    %2317 = vmatprep.subr.mxu0 %v2109
    %2318 = vmatpush1.msra.mxu0 %v2108
    %2319 = vmatprep.mubr.f32.mxu0 %v55
    %2320 = vmatmul.mubr.f32.gmra.mrb[0].mxu0 %v54
    %v2321 = vpop.f32.mrb[0].mxu0
    %v2322 = vadd.f32 %v2248, %v2321
    %v2323 = vpop.f32.mrb[0].mxu0
    %v2324 = vadd.f32 %v2252, %v2323
    %2325 = vdwg.mxu0
    %2326 = vmatprep.subr.mxu0 %v2111
    %2327 = vmatpush1.msra.mxu0 %v2110
    %2328 = vmatprep.subr.mxu0 %v2113
    %2329 = vmatpush1.msra.mxu0 %v2112
    %2330 = vmatprep.subr.mxu0 %v2115
    %2331 = vmatpush1.msra.mxu0 %v2114
    %2332 = vmatprep.subr.mxu0 %v2117
    %2333 = vmatpush1.msra.mxu0 %v2116
    %2334 = vmatprep.subr.mxu0 %v2119
    %2335 = vmatpush1.msra.mxu0 %v2118
    %2336 = vmatprep.subr.mxu0 %v2121
    %2337 = vmatpush1.msra.mxu0 %v2120
    %2338 = vmatprep.subr.mxu0 %v2123
    %2339 = vmatpush1.msra.mxu0 %v2122
    %2340 = vmatprep.subr.mxu0 %v2125
    %2341 = vmatpush1.msra.mxu0 %v2124
    %2342 = vmatprep.subr.mxu0 %v2127
    %2343 = vmatpush1.msra.mxu0 %v2126
    %2344 = vmatprep.subr.mxu0 %v2129
    %2345 = vmatpush1.msra.mxu0 %v2128
    %2346 = vmatprep.subr.mxu0 %v2131
    %2347 = vmatpush1.msra.mxu0 %v2130
    %2348 = vmatprep.subr.mxu0 %v2133
    %2349 = vmatpush1.msra.mxu0 %v2132
    %2350 = vmatprep.subr.mxu0 %v2135
    %2351 = vmatpush1.msra.mxu0 %v2134
    %2352 = vmatprep.subr.mxu0 %v2137
    %2353 = vmatpush1.msra.mxu0 %v2136
    %2354 = vmatprep.subr.mxu0 %v2139
    %2355 = vmatpush1.msra.mxu0 %v2138
    %2356 = vmatprep.subr.mxu0 %v2141
    %2357 = vmatpush1.msra.mxu0 %v2140
    %2358 = vmatprep.subr.mxu0 %v2143
    %2359 = vmatpush1.msra.mxu0 %v2142
    %2360 = vmatprep.subr.mxu0 %v2145
    %2361 = vmatpush1.msra.mxu0 %v2144
    %2362 = vmatprep.subr.mxu0 %v2147
    %2363 = vmatpush1.msra.mxu0 %v2146
    %2364 = vmatprep.subr.mxu0 %v2149
    %2365 = vmatpush1.msra.mxu0 %v2148
    %2366 = vmatprep.subr.mxu0 %v2151
    %2367 = vmatpush1.msra.mxu0 %v2150
    %2368 = vmatprep.subr.mxu0 %v2153
    %2369 = vmatpush1.msra.mxu0 %v2152
    %2370 = vmatprep.subr.mxu0 %v2155
    %2371 = vmatpush1.msra.mxu0 %v2154
    %2372 = vmatprep.subr.mxu0 %v2157
    %2373 = vmatpush1.msra.mxu0 %v2156
    %2374 = vmatprep.subr.mxu0 %v2159
    %2375 = vmatpush1.msra.mxu0 %v2158
    %2376 = vmatprep.subr.mxu0 %v2161
    %2377 = vmatpush1.msra.mxu0 %v2160
    %2378 = vmatprep.subr.mxu0 %v2163
    %2379 = vmatpush1.msra.mxu0 %v2162
    %2380 = vmatprep.subr.mxu0 %v2165
    %2381 = vmatpush1.msra.mxu0 %v2164
    %2382 = vmatprep.subr.mxu0 %v2167
    %2383 = vmatpush1.msra.mxu0 %v2166
    %2384 = vmatprep.subr.mxu0 %v2169
    %2385 = vmatpush1.msra.mxu0 %v2168
    %2386 = vmatprep.subr.mxu0 %v2171
    %2387 = vmatpush1.msra.mxu0 %v2170
    %2388 = vmatprep.subr.mxu0 %v2173
    %2389 = vmatpush1.msra.mxu0 %v2172
    %2390 = vmatprep.mubr.f32.mxu0 %v57
    %2391 = vmatmul.mubr.f32.gmra.mrb[0].mxu0 %v56
    %v2392 = vpop.f32.mrb[0].mxu0
    %v2393 = vadd.f32 %v2322, %v2392
    %v2394 = vpop.f32.mrb[0].mxu0
    %v2395 = vadd.f32 %v2324, %v2394
    %2396 = vdwg.mxu0
    %2397 = vmatprep.subr.mxu0 %v2175
    %2398 = vmatpush1.msra.mxu0 %v2174
    %2399 = vmatprep.subr.mxu0 %v2177
    %2400 = vmatpush1.msra.mxu0 %v2176
    %2401 = vmatprep.subr.mxu0 %v2179
    %2402 = vmatpush1.msra.mxu0 %v2178
    %2403 = vmatprep.subr.mxu0 %v2181
    %2404 = vmatpush1.msra.mxu0 %v2180
    %2405 = vmatprep.subr.mxu0 %v2183
    %2406 = vmatpush1.msra.mxu0 %v2182
    %2407 = vmatprep.subr.mxu0 %v2185
    %2408 = vmatpush1.msra.mxu0 %v2184
    %2409 = vmatprep.subr.mxu0 %v2187
    %2410 = vmatpush1.msra.mxu0 %v2186
    %2411 = vmatprep.subr.mxu0 %v2189
    %2412 = vmatpush1.msra.mxu0 %v2188
    %2413 = vmatprep.subr.mxu0 %v2191
    %2414 = vmatpush1.msra.mxu0 %v2190
    %2415 = vmatprep.subr.mxu0 %v2193
    %2416 = vmatpush1.msra.mxu0 %v2192
    %2417 = vmatprep.subr.mxu0 %v2195
    %2418 = vmatpush1.msra.mxu0 %v2194
    %2419 = vmatprep.subr.mxu0 %v2197
    %2420 = vmatpush1.msra.mxu0 %v2196
    %2421 = vmatprep.subr.mxu0 %v2199
    %2422 = vmatpush1.msra.mxu0 %v2198
    %2423 = vmatprep.subr.mxu0 %v2201
    %2424 = vmatpush1.msra.mxu0 %v2200
    %2425 = vmatprep.subr.mxu0 %v2203
    %2426 = vmatpush1.msra.mxu0 %v2202
    %2427 = vmatprep.subr.mxu0 %v2205
    %2428 = vmatpush1.msra.mxu0 %v2204
    %2429 = vmatprep.subr.mxu0 %v2207
    %2430 = vmatpush1.msra.mxu0 %v2206
    %2431 = vmatprep.subr.mxu0 %v2209
    %2432 = vmatpush1.msra.mxu0 %v2208
    %2433 = vmatprep.subr.mxu0 %v2211
    %2434 = vmatpush1.msra.mxu0 %v2210
    %2435 = vmatprep.subr.mxu0 %v2213
    %2436 = vmatpush1.msra.mxu0 %v2212
    %2437 = vmatprep.subr.mxu0 %v2215
    %2438 = vmatpush1.msra.mxu0 %v2214
    %2439 = vmatprep.subr.mxu0 %v2217
    %2440 = vmatpush1.msra.mxu0 %v2216
    %2441 = vmatprep.subr.mxu0 %v2219
    %2442 = vmatpush1.msra.mxu0 %v2218
    %2443 = vmatprep.subr.mxu0 %v2221
    %2444 = vmatpush1.msra.mxu0 %v2220
    %2445 = vmatprep.subr.mxu0 %v2223
    %2446 = vmatpush1.msra.mxu0 %v2222
    %2447 = vmatprep.subr.mxu0 %v2225
    %2448 = vmatpush1.msra.mxu0 %v2224
    %2449 = vmatprep.subr.mxu0 %v2227
    %2450 = vmatpush1.msra.mxu0 %v2226
    %2451 = vmatprep.subr.mxu0 %v2229
    %2452 = vmatpush1.msra.mxu0 %v2228
    %2453 = vmatprep.subr.mxu0 %v2231
    %2454 = vmatpush1.msra.mxu0 %v2230
    %2455 = vmatprep.subr.mxu0 %v2233
    %2456 = vmatpush1.msra.mxu0 %v2232
    %2457 = vmatprep.subr.mxu0 %v2235
    %2458 = vmatpush1.msra.mxu0 %v2234
    %2459 = vmatprep.subr.mxu0 %v2237
    %2460 = vmatpush1.msra.mxu0 %v2236
    %2461 = vmatprep.mubr.f32.mxu0 %v59
    %2462 = vmatmul.mubr.f32.gmra.mrb[0].mxu0 %v58
    %v2463 = vpop.f32.mrb[0].mxu0
    %v2464 = vadd.f32 %v2393, %v2463
    %v2465 = vpop.f32.mrb[0].mxu0
    %v2466 = vadd.f32 %v2395, %v2465
    %2467 = vdwg.mxu0
    %2468 = vmatprep.subr.mxu0 %v2239
    %2469 = vmatpush1.msra.mxu0 %v2238
    %2470 = vmatprep.subr.mxu0 %v2241
    %2471 = vmatpush1.msra.mxu0 %v2240
    %2472 = vmatprep.subr.mxu0 0.0
    %2473 = vmatpush1.msra.mxu0 0.0
    %2474 = vmatprep.subr.mxu0 0.0
    %2475 = vmatpush1.msra.mxu0 0.0
    %2476 = vmatprep.subr.mxu0 0.0
    %2477 = vmatpush1.msra.mxu0 0.0
    %2478 = vmatprep.subr.mxu0 0.0
    %2479 = vmatpush1.msra.mxu0 0.0
    %2480 = vmatprep.subr.mxu0 0.0
    %2481 = vmatpush1.msra.mxu0 0.0
    %2482 = vmatprep.subr.mxu0 0.0
    %2483 = vmatpush1.msra.mxu0 0.0
    %2484 = vmatprep.subr.mxu0 0.0
    %2485 = vmatpush1.msra.mxu0 0.0
    %2486 = vmatprep.subr.mxu0 0.0
    %2487 = vmatpush1.msra.mxu0 0.0
    %2488 = vmatprep.subr.mxu0 0.0
    %2489 = vmatpush1.msra.mxu0 0.0
    %2490 = vmatprep.subr.mxu0 0.0
    %2491 = vmatpush1.msra.mxu0 0.0
    %2492 = vmatprep.subr.mxu0 0.0
    %2493 = vmatpush1.msra.mxu0 0.0
    %2494 = vmatprep.subr.mxu0 0.0
    %2495 = vmatpush1.msra.mxu0 0.0
    %2496 = vmatprep.subr.mxu0 0.0
    %2497 = vmatpush1.msra.mxu0 0.0
    %2498 = vmatprep.subr.mxu0 0.0
    %2499 = vmatpush1.msra.mxu0 0.0
    %2500 = vmatprep.subr.mxu0 0.0
    %2501 = vmatpush1.msra.mxu0 0.0
    %2502 = vmatprep.subr.mxu0 0.0
    %2503 = vmatpush1.msra.mxu0 0.0
    %2504 = vmatprep.subr.mxu0 0.0
    %2505 = vmatpush1.msra.mxu0 0.0
    %2506 = vmatprep.subr.mxu0 0.0
    %2507 = vmatpush1.msra.mxu0 0.0
    %2508 = vmatprep.subr.mxu0 0.0
    %2509 = vmatpush1.msra.mxu0 0.0
    %2510 = vmatprep.subr.mxu0 0.0
    %2511 = vmatpush1.msra.mxu0 0.0
    %2512 = vmatprep.subr.mxu0 0.0
    %2513 = vmatpush1.msra.mxu0 0.0
    %2514 = vmatprep.subr.mxu0 0.0
    %2515 = vmatpush1.msra.mxu0 0.0
    %2516 = vmatprep.subr.mxu0 0.0
    %2517 = vmatpush1.msra.mxu0 0.0
    %2518 = vmatprep.subr.mxu0 0.0
    %2519 = vmatpush1.msra.mxu0 0.0
    %2520 = vmatprep.subr.mxu0 0.0
    %2521 = vmatpush1.msra.mxu0 0.0
    %2522 = vmatprep.subr.mxu0 0.0
    %2523 = vmatpush1.msra.mxu0 0.0
    %2524 = vmatprep.subr.mxu0 0.0
    %2525 = vmatpush1.msra.mxu0 0.0
    %2526 = vmatprep.subr.mxu0 0.0
    %2527 = vmatpush1.msra.mxu0 0.0
    %2528 = vmatprep.subr.mxu0 0.0
    %2529 = vmatpush1.msra.mxu0 0.0
    %2530 = vmatprep.subr.mxu0 0.0
    %2531 = vmatpush1.msra.mxu0 0.0
    %2532 = vmatprep.mubr.f32.mxu0 0.0
    %2533 = vmatmul.mubr.f32.gmra.mrb[0].mxu0 %v271
    %v2534 = vpop.f32.mrb[0].mxu0
    %v2535 = vadd.f32 %v2464, %v2534
    %v2536 = vpop.f32.mrb[0].mxu0
    %v2537 = vadd.f32 %v2466, %v2536
    %2538 = vdwg.mxu0
    %v2539 = vmax.f32 %v2043, %v2535
    %v2540 = vmax.f32 %v2044, %v2537
    %2541 = vst [vmem:[#allocation8] sm:$0xff] %v2539
    %vm2542 = vcmask 916480
    %2543 = vst.msk [vmem:[#allocation8 + $0x8] sm:$0xff] %vm2542, %v2540
    // Predicated region
    $region26: #{tpu_custom_call.1} parent=1 // pred_check
      _
    $region27: #{tpu_custom_call.1} parent=1 // pred_check_branch
      %2545 = sbr.rel (0) target = $region29
    $region28: #{tpu_custom_call.1} parent=1 // pred_region
      %s2547 = ssub.s32 256, 256
      %2548 = vsyncadd [#allocation4], %s2547
      %s2550 = sshll.u32 [#allocation8], 4
      %s2551 = int_to_ptr.vmem [resolvable:$true] %s2550
      %2553 = dma.vmem_to_hbm [thread:$0]  %s2551, 256, %s3, [#allocation4]
    $region29: #{tpu_custom_call.1} parent=1 // pred_fallthru
      _
    // Predicated region
    $region30: #{tpu_custom_call.1} parent=1 // pred_check
      _
    $region31: #{tpu_custom_call.1} parent=1 // pred_check_branch
      %2555 = sbr.rel (0) target = $region33
    $region32: #{tpu_custom_call.1} parent=1 // pred_region
      %2556 = dma.done [#allocation4], 256
    $region33: #{tpu_custom_call.1} parent=1 // pred_fallthru
      _
    %2557 = vsyncpa [#allocation3], 1
    %2558 = vsyncpa [#allocation6], 1
    %2559 = vsyncpa [#allocation4], 1

</llo_original>
